<compile_context>
chip_gen: v5e
topology: v5e:2x2
jax: 0.10.0
libtpu: 0.0.40
codegen_flags: <defaults>
</compile_context>

<pallas_src>
import jax
import jax.numpy as jnp
from jax.experimental import pallas as pl
from jax.experimental.pallas import tpu as pltpu

D = 640  # = 5 * 128, lane-aligned


def mlp_kernel(x_ref, w1_ref, b1_ref, w2_ref, b2_ref, o_ref):
    # Cast x to the weight dtype inside the kernel (VPU cast, hidden under MXU
    # time) so the wrapper never spends an extra HBM pass on the cast.
    x = x_ref[...].astype(w1_ref.dtype)
    h = jnp.dot(x, w1_ref[...], preferred_element_type=jnp.float32)
    h = h + b1_ref[...]
    # LeakyReLU(negative_slope=0.2): single vmax per vreg.
    h = jnp.maximum(h, 0.2 * h)
    y = jnp.dot(h.astype(w2_ref.dtype), w2_ref[...],
                preferred_element_type=jnp.float32)
    y = y + b2_ref[...]
    o_ref[...] = y.astype(o_ref.dtype)


def _supports_single_buffered_consts():
    # Narrow, one-time feature detection for pipeline_mode=pl.Buffered(1).
    if not hasattr(pl, "Buffered"):
        return False
    try:
        pl.BlockSpec((8, 128), lambda i: (0, 0), pipeline_mode=pl.Buffered(1))
        return True
    except TypeError:
        return False


_SINGLE_BUFFER_CONSTS = _supports_single_buffered_consts()


def _build_call(B, tm, grid_steps, x_dtype, w_dtype, out_dtype, vmem_limit):
    x_spec = pl.BlockSpec((tm, D), lambda i: (i, 0))
    out_spec = pl.BlockSpec((tm, D), lambda i: (i, 0))

    def const_spec(shape):
        # Block never changes across the grid -> VMEM-resident; one buffer is
        # enough (saves a pointless second pipeline buffer, ~1.6-3.2 MiB).
        if _SINGLE_BUFFER_CONSTS:
            return pl.BlockSpec(shape, lambda i: (0, 0),
                                pipeline_mode=pl.Buffered(1))
        return pl.BlockSpec(shape, lambda i: (0, 0))

    # v7x has 2 TensorCores per chip: shard the batch axis whenever there are
    # at least 2 grid steps.  Harmless (single TC) on v5e/v6e.
    sems = ("parallel",) if grid_steps >= 2 else ("arbitrary",)

    w_bytes = 2 * D * D * jnp.dtype(w_dtype).itemsize + 2 * D * 4
    cost = pl.CostEstimate(
        flops=4 * B * D * D,                      # two (B,640)x(640,640) matmuls
        transcendentals=0,
        bytes_accessed=(B * D * jnp.dtype(x_dtype).itemsize
                        + B * D * jnp.dtype(out_dtype).itemsize
                        + w_bytes),
    )

    return pl.pallas_call(
        mlp_kernel,
        out_shape=jax.ShapeDtypeStruct((B, D), out_dtype),
        grid_spec=pltpu.PrefetchScalarGridSpec(
            num_scalar_prefetch=0,
            grid=(grid_steps,),
            in_specs=[
                x_spec,
                const_spec((D, D)),   # w1 (resident in VMEM)
                const_spec((1, D)),   # b1
                const_spec((D, D)),   # w2 (resident in VMEM)
                const_spec((1, D)),   # b2
            ],
            out_specs=out_spec,
        ),
        compiler_params=pltpu.CompilerParams(
            dimension_semantics=sems,
            vmem_limit_bytes=vmem_limit,
        ),
        cost_estimate=cost,
    )


def prepare_params(w1, b1, w2, b2, *, use_bf16=True):
    """Cast the parameters ONCE (keep weights persistently in bf16 for the fast
    MXU path on v5e/v6e/v7x; use_bf16=False gives exact f32 module numerics).
    Biases stay f32 and are pre-reshaped to (1, 640)."""
    w_dtype = jnp.bfloat16 if use_bf16 else jnp.float32
    return (jnp.asarray(w1).astype(w_dtype),
            jnp.asarray(b1, jnp.float32).reshape(1, D),
            jnp.asarray(w2).astype(w_dtype),
            jnp.asarray(b2, jnp.float32).reshape(1, D))


def embedding_net_640to640(x, w1, b1, w2, b2, *, tm=512, out_dtype=None):
    """Forward pass of EmbeddingNet640to640.

    x: (B, 640).  w1, w2: (640, 640) stored as (in, out) = W_pytorch.T, in
    f32 (exact) or bf16 (fast MXU path).  b1, b2: (640,) or (1, 640), f32.
    out_dtype defaults to x.dtype; pass jnp.bfloat16 when the consumer accepts
    it to halve the output HBM stream."""
    B, Din = x.shape
    assert Din == D
    out_dtype = jnp.dtype(x.dtype) if out_dtype is None else jnp.dtype(out_dtype)

    b1_2d = jnp.asarray(b1, jnp.float32).reshape(1, D)
    b2_2d = jnp.asarray(b2, jnp.float32).reshape(1, D)

    # Row alignment for the batch tile: 8 for 32-bit x/out tiles, 16 when any
    # 16-bit (sublane-packed) x or output tile is involved.
    align = 16 if (jnp.dtype(x.dtype).itemsize == 2 or out_dtype.itemsize == 2) else 8

    def rup(v, m):
        return ((v + m - 1) // m) * m

    # Biggest tile that makes sense: no larger than the aligned batch, capped
    # at 4096 rows (v7x 64 MiB VMEM budget).  Ragged batches are handled by a
    # partial last block (Pallas clips the writeback DMA) -- no jnp.pad copy.
    tm_eff = max(align, min(rup(tm, align), rup(B, align), 4096))
    grid_steps = pl.cdiv(B, tm_eff)

    # VMEM: double-buffered x/out tiles + (single- or double-buffered) weights.
    const_buffers = 1 if _SINGLE_BUFFER_CONSTS else 2
    vmem_need = (2 * tm_eff * D * jnp.dtype(x.dtype).itemsize
                 + 2 * tm_eff * D * out_dtype.itemsize
                 + const_buffers * (2 * D * D * jnp.dtype(w1.dtype).itemsize
                                    + 2 * D * 4))
    vmem_limit = None
    if vmem_need > 13 * 1024 * 1024:
        # Above the smallest default scoped-VMEM (v5e: 16 MiB): raise the limit
        # explicitly, staying safely under v7x's 64 MiB physical VMEM.
        vmem_limit = min(int(vmem_need * 1.25) + (2 << 20), 56 * 1024 * 1024)

    call = _build_call(B, tm_eff, grid_steps, x.dtype, w1.dtype, out_dtype,
                       vmem_limit)
    return call(x, w1, b1_2d, w2, b2_2d)


def reference(x, w1, b1, w2, b2):
    h = x @ w1 + b1
    h = jnp.where(h >= 0, h, 0.2 * h)
    return h @ w2 + b2


if __name__ == "__main__":
    key = jax.random.PRNGKey(0)
    kx, kw1, kb1, kw2, kb2 = jax.random.split(key, 5)

    # Deterministic parameter init (uniform, PyTorch-Linear-like bound 1/sqrt(640)).
    bound = 1.0 / jnp.sqrt(jnp.float32(D))
    w1 = jax.random.uniform(kw1, (D, D), minval=-bound, maxval=bound, dtype=jnp.float32)
    b1 = jax.random.uniform(kb1, (D,), minval=-bound, maxval=bound, dtype=jnp.float32)
    w2 = jax.random.uniform(kw2, (D, D), minval=-bound, maxval=bound, dtype=jnp.float32)
    b2 = jax.random.uniform(kb2, (D,), minval=-bound, maxval=bound, dtype=jnp.float32)

    # --- exact f32 path (matches the PyTorch module numerics), single grid step ---
    B = 16
    x = jax.random.normal(kx, (B, D), dtype=jnp.float32)
    p_f32 = prepare_params(w1, b1, w2, b2, use_bf16=False)
    out = jax.block_until_ready(embedding_net_640to640(x, *p_f32))
    ref = reference(x, w1, b1, w2, b2)
    assert out.shape == (B, D) and out.dtype == jnp.float32
    assert jnp.allclose(out, ref, atol=1e-4, rtol=1e-4), "f32 path mismatch"

    # --- bf16 fast path + ragged batch (exercises the partial last block) ---
    B2 = 20
    x2 = jax.random.normal(jax.random.PRNGKey(1), (B2, D), dtype=jnp.float32)
    p_bf16 = prepare_params(w1, b1, w2, b2, use_bf16=True)
    out2 = jax.block_until_ready(embedding_net_640to640(x2, *p_bf16))
    ref2 = reference(x2, w1, b1, w2, b2)
    assert out2.shape == (B2, D) and out2.dtype == jnp.float32
    assert jnp.allclose(out2, ref2, atol=5e-2, rtol=5e-2), "bf16 ragged mismatch"

    # --- bf16 output variant (lane-dense 640-wide stores stay unmasked) ---
    out3 = jax.block_until_ready(
        embedding_net_640to640(x2, *p_bf16, out_dtype=jnp.bfloat16))
    assert out3.shape == (B2, D) and out3.dtype == jnp.bfloat16
    assert jnp.allclose(out3.astype(jnp.float32), ref2, atol=1e-1, rtol=1e-1), \
        "bf16-out mismatch"

    print("KERNEL_OK")
</pallas_src>

<mosaic_0001>
module attributes {stable_mosaic.version = 11 : i64} {
  func.func @mlp_kernel(%arg0: i32, %arg1: memref<16x640xf32, #tpu.memory_space<vmem>>, %arg2: memref<640x640xf32, #tpu.memory_space<vmem>>, %arg3: memref<1x640xf32, #tpu.memory_space<vmem>>, %arg4: memref<640x640xf32, #tpu.memory_space<vmem>>, %arg5: memref<1x640xf32, #tpu.memory_space<vmem>>, %arg6: memref<16x640xf32, #tpu.memory_space<vmem>>) attributes {dimension_semantics = [#tpu.dimension_semantics<arbitrary>], iteration_bounds = array<i64: 1>, scalar_prefetch = 0 : i64, scratch_operands = 0 : i64, tpu.core_type = #tpu.core_type<tc>, window_params = [{transform_indices = @transform_0, window_bounds = array<i64: 16, 640>}, {pipeline_mode = #tpu.pipeline_mode<synchronous>, transform_indices = @transform_1, window_bounds = array<i64: 640, 640>}, {pipeline_mode = #tpu.pipeline_mode<synchronous>, transform_indices = @transform_2, window_bounds = array<i64: 1, 640>}, {pipeline_mode = #tpu.pipeline_mode<synchronous>, transform_indices = @transform_3, window_bounds = array<i64: 640, 640>}, {pipeline_mode = #tpu.pipeline_mode<synchronous>, transform_indices = @transform_4, window_bounds = array<i64: 1, 640>}, {transform_indices = @transform_5, window_bounds = array<i64: 16, 640>}]} {
    %c0 = arith.constant 0 : index
    %c0_0 = arith.constant 0 : index
    %0 = vector.load %arg1[%c0, %c0_0] : memref<16x640xf32, #tpu.memory_space<vmem>>, vector<16x640xf32>
    %c0_1 = arith.constant 0 : index
    %c0_2 = arith.constant 0 : index
    %1 = vector.load %arg2[%c0_1, %c0_2] : memref<640x640xf32, #tpu.memory_space<vmem>>, vector<640x640xf32>
    %cst = arith.constant dense<0.000000e+00> : vector<16x640xf32>
    %2 = tpu.matmul %0, %1, %cst {dimension_numbers = #tpu.dot_dimension_numbers<[1], [0], [0], [1], [0, 0, 1, 1], [], []>} : vector<16x640xf32>, vector<640x640xf32>, vector<16x640xf32> -> vector<16x640xf32>
    %c0_3 = arith.constant 0 : index
    %c0_4 = arith.constant 0 : index
    %3 = vector.load %arg3[%c0_3, %c0_4] : memref<1x640xf32, #tpu.memory_space<vmem>>, vector<1x640xf32>
    %4 = vector.broadcast %3 : vector<1x640xf32> to vector<16x640xf32>
    %5 = arith.addf %2, %4 : vector<16x640xf32>
    %cst_5 = arith.constant 2.000000e-01 : f32
    %6 = vector.broadcast %cst_5 : f32 to vector<16x640xf32>
    %7 = arith.mulf %6, %5 : vector<16x640xf32>
    %8 = arith.maximumf %5, %7 : vector<16x640xf32>
    %c0_6 = arith.constant 0 : index
    %c0_7 = arith.constant 0 : index
    %9 = vector.load %arg4[%c0_6, %c0_7] : memref<640x640xf32, #tpu.memory_space<vmem>>, vector<640x640xf32>
    %cst_8 = arith.constant dense<0.000000e+00> : vector<16x640xf32>
    %10 = tpu.matmul %8, %9, %cst_8 {dimension_numbers = #tpu.dot_dimension_numbers<[1], [0], [0], [1], [0, 0, 1, 1], [], []>} : vector<16x640xf32>, vector<640x640xf32>, vector<16x640xf32> -> vector<16x640xf32>
    %c0_9 = arith.constant 0 : index
    %c0_10 = arith.constant 0 : index
    %11 = vector.load %arg5[%c0_9, %c0_10] : memref<1x640xf32, #tpu.memory_space<vmem>>, vector<1x640xf32>
    %12 = vector.broadcast %11 : vector<1x640xf32> to vector<16x640xf32>
    %13 = arith.addf %10, %12 : vector<16x640xf32>
    %c0_11 = arith.constant 0 : index
    %c0_12 = arith.constant 0 : index
    %14 = vector.load %arg6[%c0_11, %c0_12] : memref<16x640xf32, #tpu.memory_space<vmem>>, vector<16x640xf32>
    tpu.vector_store %arg6[%c0_11, %c0_12], %13 {strides = array<i32>} : memref<16x640xf32, #tpu.memory_space<vmem>>, vector<16x640xf32>,
    return
  }
  func.func @transform_0(%arg0: i32) -> (i32, i32) {
    %c0_i32 = arith.constant 0 : i32
    %c0_i32_0 = arith.constant 0 : i32
    return %arg0, %c0_i32 : i32, i32
  }
  func.func @transform_1(%arg0: i32) -> (i32, i32) {
    %c0_i32 = arith.constant 0 : i32
    %c0_i32_0 = arith.constant 0 : i32
    %c0_i32_1 = arith.constant 0 : i32
    return %c0_i32, %c0_i32_0 : i32, i32
  }
  func.func @transform_2(%arg0: i32) -> (i32, i32) {
    %c0_i32 = arith.constant 0 : i32
    %c0_i32_0 = arith.constant 0 : i32
    %c0_i32_1 = arith.constant 0 : i32
    return %c0_i32, %c0_i32_0 : i32, i32
  }
  func.func @transform_3(%arg0: i32) -> (i32, i32) {
    %c0_i32 = arith.constant 0 : i32
    %c0_i32_0 = arith.constant 0 : i32
    %c0_i32_1 = arith.constant 0 : i32
    return %c0_i32, %c0_i32_0 : i32, i32
  }
  func.func @transform_4(%arg0: i32) -> (i32, i32) {
    %c0_i32 = arith.constant 0 : i32
    %c0_i32_0 = arith.constant 0 : i32
    %c0_i32_1 = arith.constant 0 : i32
    return %c0_i32, %c0_i32_0 : i32, i32
  }
  func.func @transform_5(%arg0: i32) -> (i32, i32) {
    %c0_i32 = arith.constant 0 : i32
    %c0_i32_0 = arith.constant 0 : i32
    return %arg0, %c0_i32 : i32, i32
  }
}

</mosaic_0001>

<llo_original>
// kernel: tpu_custom_call.1
$region0: #{tpu_custom_call.1}
  #allocation0 [shape = 'u32[]', space=smem, size = 0x4, offset = 0x4, fixed_abs, tag = 'smem constant byte address 0x4 - core index']
  #allocation1 [shape = 'u32[72,128]{1,0:T(1,128)}', space=vmem, size = 0x9000, scoped, tag = 'internal scratch']
  %s0 = inlined_call_operand.hbm [shape: f32[16,640], index: 0, kind: input, shape index: {}]
  %s1 = inlined_call_operand.hbm [shape: f32[640,640], index: 1, kind: input, shape index: {}]
  %s2 = inlined_call_operand.hbm [shape: f32[1,640], index: 2, kind: input, shape index: {}]
  %s3 = inlined_call_operand.hbm [shape: f32[640,640], index: 3, kind: input, shape index: {}]
  %s4 = inlined_call_operand.hbm [shape: f32[1,640], index: 4, kind: input, shape index: {}]
  %s5 = inlined_call_operand.hbm [shape: f32[16,640], index: 5, kind: output, shape index: {}]
  %s6 = sld [smem:[#allocation0]]
  $region50: #{tpu_custom_call.1} parent=0
    _
  %s8 = ssub.s32 1, %s6
  %s9 = scalar_select 0, %s8, %s6
  $region1: #{tpu_custom_call.1} parent=0
    #allocation2 [shape = 'u8[40960]{0}', space=vmem, size = 0xa000, scoped, tag = 'input window, operand 0, single buffered']
    #allocation3 [shape = 's32[1]{0}', space=sflag, size = 0x4, scoped, tag = 'scoped memory for tpu_custom_call.1']
    #allocation4 [shape = 's32[1]{0}', space=sflag, size = 0x4, scoped, tag = 'scoped memory for tpu_custom_call.1']
    #allocation5 [shape = 'u8[1638400]{0}', space=vmem, size = 0x190000, scoped, tag = 'input window, operand 1, single buffered']
    #allocation6 [shape = 's32[1]{0}', space=sflag, size = 0x4, scoped, tag = 'scoped memory for tpu_custom_call.1']
    #allocation7 [shape = 'u8[2560]{0}', space=vmem, size = 0xc00, scoped, tag = 'input window, operand 2, single buffered']
    #allocation8 [shape = 'u8[1638400]{0}', space=vmem, size = 0x190000, scoped, tag = 'input window, operand 3, single buffered']
    #allocation9 [shape = 's32[1]{0}', space=sflag, size = 0x4, scoped, tag = 'scoped memory for tpu_custom_call.1']
    #allocation10 [shape = 'u8[2560]{0}', space=vmem, size = 0xc00, scoped, tag = 'input window, operand 4, single buffered']
    #allocation11 [shape = 'u8[40960]{0}', space=vmem, size = 0xa000, scoped, tag = 'output window, operand 0, single buffered']
    %10 = vsyncpa [#allocation3], 0
    %11 = vsyncpa [#allocation6], 0
    %12 = vsyncpa [#allocation9], 0
    %13 = vsyncpa [#allocation4], 0
    // Predicated region
    $region2: #{tpu_custom_call.1} parent=1 // pred_check
      _
    $region3: #{tpu_custom_call.1} parent=1 // pred_check_branch
      %15 = sbr.rel (0) target = $region5
    $region4: #{tpu_custom_call.1} parent=1 // pred_region
      %17 = vsyncadd [#allocation3], 0
      %s18 = sshll.u32 %s0, 4
      %s19 = int_to_ptr.hbm [resolvable:$true] %s18
      %s20 = sshll.u32 [#allocation2], 4
      %s21 = int_to_ptr.vmem [resolvable:$true] %s20
      %26 = dma.hbm_to_vmem [thread:$0]  %s19, 1280, %s21, [#allocation3], 640, 640, 40
    $region5: #{tpu_custom_call.1} parent=1 // pred_fallthru
      _
    // Predicated region
    $region6: #{tpu_custom_call.1} parent=1 // pred_check
      _
    $region7: #{tpu_custom_call.1} parent=1 // pred_check_branch
      %28 = sbr.rel (0) target = $region9
    $region8: #{tpu_custom_call.1} parent=1 // pred_region
      %30 = vsyncadd [#allocation6], 0
      %s31 = sshll.u32 %s1, 4
      %s32 = int_to_ptr.hbm [resolvable:$true] %s31
      %s33 = sshll.u32 [#allocation5], 4
      %s34 = int_to_ptr.vmem [resolvable:$true] %s33
      %39 = dma.hbm_to_vmem [thread:$0]  %s32, 51200, %s34, [#allocation6], 640, 640, 40
    $region9: #{tpu_custom_call.1} parent=1 // pred_fallthru
      _
    // Predicated region
    $region10: #{tpu_custom_call.1} parent=1 // pred_check
      _
    $region11: #{tpu_custom_call.1} parent=1 // pred_check_branch
      %41 = sbr.rel (0) target = $region13
    $region12: #{tpu_custom_call.1} parent=1 // pred_region
      %43 = vsyncadd [#allocation6], 0
      %s45 = sshll.u32 %s2, 4
      %s46 = int_to_ptr.hbm [resolvable:$true] %s45
      %s47 = sshll.u32 [#allocation7], 4
      %s48 = int_to_ptr.vmem [resolvable:$true] %s47
      %50 = dma.hbm_to_vmem [thread:$0]  %s46, 80, %s48, [#allocation6]
    $region13: #{tpu_custom_call.1} parent=1 // pred_fallthru
      _
    // Predicated region
    $region14: #{tpu_custom_call.1} parent=1 // pred_check
      _
    $region15: #{tpu_custom_call.1} parent=1 // pred_check_branch
      %52 = sbr.rel (0) target = $region17
    $region16: #{tpu_custom_call.1} parent=1 // pred_region
      %54 = vsyncadd [#allocation9], 0
      %s55 = sshll.u32 %s3, 4
      %s56 = int_to_ptr.hbm [resolvable:$true] %s55
      %s57 = sshll.u32 [#allocation8], 4
      %s58 = int_to_ptr.vmem [resolvable:$true] %s57
      %63 = dma.hbm_to_vmem [thread:$0]  %s56, 51200, %s58, [#allocation9], 640, 640, 40
    $region17: #{tpu_custom_call.1} parent=1 // pred_fallthru
      _
    // Predicated region
    $region18: #{tpu_custom_call.1} parent=1 // pred_check
      _
    $region19: #{tpu_custom_call.1} parent=1 // pred_check_branch
      %65 = sbr.rel (0) target = $region21
    $region20: #{tpu_custom_call.1} parent=1 // pred_region
      %67 = vsyncadd [#allocation9], 0
      %s69 = sshll.u32 %s4, 4
      %s70 = int_to_ptr.hbm [resolvable:$true] %s69
      %s71 = sshll.u32 [#allocation10], 4
      %s72 = int_to_ptr.vmem [resolvable:$true] %s71
      %74 = dma.hbm_to_vmem [thread:$0]  %s70, 80, %s72, [#allocation9]
    $region21: #{tpu_custom_call.1} parent=1 // pred_fallthru
      _
    // Predicated region
    $region22: #{tpu_custom_call.1} parent=1 // pred_check
      _
    $region23: #{tpu_custom_call.1} parent=1 // pred_check_branch
      %76 = sbr.rel (0) target = $region25
    $region24: #{tpu_custom_call.1} parent=1 // pred_region
      %78 = dma.done [#allocation3], 1280
    $region25: #{tpu_custom_call.1} parent=1 // pred_fallthru
      _
    // Predicated region
    $region26: #{tpu_custom_call.1} parent=1 // pred_check
      _
    $region27: #{tpu_custom_call.1} parent=1 // pred_check_branch
      %80 = sbr.rel (0) target = $region29
    $region28: #{tpu_custom_call.1} parent=1 // pred_region
      %82 = dma.done [#allocation6], 51200
    $region29: #{tpu_custom_call.1} parent=1 // pred_fallthru
      _
    // Predicated region
    $region30: #{tpu_custom_call.1} parent=1 // pred_check
      _
    $region31: #{tpu_custom_call.1} parent=1 // pred_check_branch
      %84 = sbr.rel (0) target = $region33
    $region32: #{tpu_custom_call.1} parent=1 // pred_region
      %86 = dma.done [#allocation6], 80
    $region33: #{tpu_custom_call.1} parent=1 // pred_fallthru
      _
    // Predicated region
    $region34: #{tpu_custom_call.1} parent=1 // pred_check
      _
    $region35: #{tpu_custom_call.1} parent=1 // pred_check_branch
      %88 = sbr.rel (0) target = $region37
    $region36: #{tpu_custom_call.1} parent=1 // pred_region
      %90 = dma.done [#allocation9], 51200
    $region37: #{tpu_custom_call.1} parent=1 // pred_fallthru
      _
    // Predicated region
    $region38: #{tpu_custom_call.1} parent=1 // pred_check
      _
    $region39: #{tpu_custom_call.1} parent=1 // pred_check_branch
      %92 = sbr.rel (0) target = $region41
    $region40: #{tpu_custom_call.1} parent=1 // pred_region
      %94 = dma.done [#allocation9], 80
    $region41: #{tpu_custom_call.1} parent=1 // pred_fallthru
      _
    %v95 = vld [vmem:[#allocation2] sm:$0xff]
    %v96 = vld [vmem:[#allocation2 + $0x8] sm:$0xff]
    %v97 = vld [vmem:[#allocation2 + $0x10] sm:$0xff]
    %v98 = vld [vmem:[#allocation2 + $0x18] sm:$0xff]
    %v99 = vld [vmem:[#allocation2 + $0x20] sm:$0xff]
    %v100 = vld [vmem:[#allocation2 + $0x28] sm:$0xff]
    %v101 = vld [vmem:[#allocation2 + $0x30] sm:$0xff]
    %v102 = vld [vmem:[#allocation2 + $0x38] sm:$0xff]
    %v103 = vld [vmem:[#allocation2 + $0x40] sm:$0xff]
    %v104 = vld [vmem:[#allocation2 + $0x48] sm:$0xff]
    %v105 = vld [vmem:[#allocation5] sm:$0xff]
    %v106 = vld [vmem:[#allocation5 + $0x8] sm:$0xff]
    %v107 = vld [vmem:[#allocation5 + $0x10] sm:$0xff]
    %v108 = vld [vmem:[#allocation5 + $0x18] sm:$0xff]
    %v109 = vld [vmem:[#allocation5 + $0x20] sm:$0xff]
    %v110 = vld [vmem:[#allocation5 + $0x28] sm:$0xff]
    %v111 = vld [vmem:[#allocation5 + $0x30] sm:$0xff]
    %v112 = vld [vmem:[#allocation5 + $0x38] sm:$0xff]
    %v113 = vld [vmem:[#allocation5 + $0x40] sm:$0xff]
    %v114 = vld [vmem:[#allocation5 + $0x48] sm:$0xff]
    %v115 = vld [vmem:[#allocation5 + $0x50] sm:$0xff]
    %v116 = vld [vmem:[#allocation5 + $0x58] sm:$0xff]
    %v117 = vld [vmem:[#allocation5 + $0x60] sm:$0xff]
    %v118 = vld [vmem:[#allocation5 + $0x68] sm:$0xff]
    %v119 = vld [vmem:[#allocation5 + $0x70] sm:$0xff]
    %v120 = vld [vmem:[#allocation5 + $0x78] sm:$0xff]
    %v121 = vld [vmem:[#allocation5 + $0x80] sm:$0xff]
    %v122 = vld [vmem:[#allocation5 + $0x88] sm:$0xff]
    %v123 = vld [vmem:[#allocation5 + $0x90] sm:$0xff]
    %v124 = vld [vmem:[#allocation5 + $0x98] sm:$0xff]
    %v125 = vld [vmem:[#allocation5 + $0xa0] sm:$0xff]
    %v126 = vld [vmem:[#allocation5 + $0xa8] sm:$0xff]
    %v127 = vld [vmem:[#allocation5 + $0xb0] sm:$0xff]
    %v128 = vld [vmem:[#allocation5 + $0xb8] sm:$0xff]
    %v129 = vld [vmem:[#allocation5 + $0xc0] sm:$0xff]
    %v130 = vld [vmem:[#allocation5 + $0xc8] sm:$0xff]
    %v131 = vld [vmem:[#allocation5 + $0xd0] sm:$0xff]
    %v132 = vld [vmem:[#allocation5 + $0xd8] sm:$0xff]
    %v133 = vld [vmem:[#allocation5 + $0xe0] sm:$0xff]
    %v134 = vld [vmem:[#allocation5 + $0xe8] sm:$0xff]
    %v135 = vld [vmem:[#allocation5 + $0xf0] sm:$0xff]
    %v136 = vld [vmem:[#allocation5 + $0xf8] sm:$0xff]
    %v137 = vld [vmem:[#allocation5 + $0x100] sm:$0xff]
    %v138 = vld [vmem:[#allocation5 + $0x108] sm:$0xff]
    %v139 = vld [vmem:[#allocation5 + $0x110] sm:$0xff]
    %v140 = vld [vmem:[#allocation5 + $0x118] sm:$0xff]
    %v141 = vld [vmem:[#allocation5 + $0x120] sm:$0xff]
    %v142 = vld [vmem:[#allocation5 + $0x128] sm:$0xff]
    %v143 = vld [vmem:[#allocation5 + $0x130] sm:$0xff]
    %v144 = vld [vmem:[#allocation5 + $0x138] sm:$0xff]
    %v145 = vld [vmem:[#allocation5 + $0x140] sm:$0xff]
    %v146 = vld [vmem:[#allocation5 + $0x148] sm:$0xff]
    %v147 = vld [vmem:[#allocation5 + $0x150] sm:$0xff]
    %v148 = vld [vmem:[#allocation5 + $0x158] sm:$0xff]
    %v149 = vld [vmem:[#allocation5 + $0x160] sm:$0xff]
    %v150 = vld [vmem:[#allocation5 + $0x168] sm:$0xff]
    %v151 = vld [vmem:[#allocation5 + $0x170] sm:$0xff]
    %v152 = vld [vmem:[#allocation5 + $0x178] sm:$0xff]
    %v153 = vld [vmem:[#allocation5 + $0x180] sm:$0xff]
    %v154 = vld [vmem:[#allocation5 + $0x188] sm:$0xff]
    %v155 = vld [vmem:[#allocation5 + $0x190] sm:$0xff]
    %v156 = vld [vmem:[#allocation5 + $0x198] sm:$0xff]
    %v157 = vld [vmem:[#allocation5 + $0x1a0] sm:$0xff]
    %v158 = vld [vmem:[#allocation5 + $0x1a8] sm:$0xff]
    %v159 = vld [vmem:[#allocation5 + $0x1b0] sm:$0xff]
    %v160 = vld [vmem:[#allocation5 + $0x1b8] sm:$0xff]
    %v161 = vld [vmem:[#allocation5 + $0x1c0] sm:$0xff]
    %v162 = vld [vmem:[#allocation5 + $0x1c8] sm:$0xff]
    %v163 = vld [vmem:[#allocation5 + $0x1d0] sm:$0xff]
    %v164 = vld [vmem:[#allocation5 + $0x1d8] sm:$0xff]
    %v165 = vld [vmem:[#allocation5 + $0x1e0] sm:$0xff]
    %v166 = vld [vmem:[#allocation5 + $0x1e8] sm:$0xff]
    %v167 = vld [vmem:[#allocation5 + $0x1f0] sm:$0xff]
    %v168 = vld [vmem:[#allocation5 + $0x1f8] sm:$0xff]
    %v169 = vld [vmem:[#allocation5 + $0x200] sm:$0xff]
    %v170 = vld [vmem:[#allocation5 + $0x208] sm:$0xff]
    %v171 = vld [vmem:[#allocation5 + $0x210] sm:$0xff]
    %v172 = vld [vmem:[#allocation5 + $0x218] sm:$0xff]
    %v173 = vld [vmem:[#allocation5 + $0x220] sm:$0xff]
    %v174 = vld [vmem:[#allocation5 + $0x228] sm:$0xff]
    %v175 = vld [vmem:[#allocation5 + $0x230] sm:$0xff]
    %v176 = vld [vmem:[#allocation5 + $0x238] sm:$0xff]
    %v177 = vld [vmem:[#allocation5 + $0x240] sm:$0xff]
    %v178 = vld [vmem:[#allocation5 + $0x248] sm:$0xff]
    %v179 = vld [vmem:[#allocation5 + $0x250] sm:$0xff]
    %v180 = vld [vmem:[#allocation5 + $0x258] sm:$0xff]
    %v181 = vld [vmem:[#allocation5 + $0x260] sm:$0xff]
    %v182 = vld [vmem:[#allocation5 + $0x268] sm:$0xff]
    %v183 = vld [vmem:[#allocation5 + $0x270] sm:$0xff]
    %v184 = vld [vmem:[#allocation5 + $0x278] sm:$0xff]
    %v185 = vld [vmem:[#allocation5 + $0x280] sm:$0xff]
    %v186 = vld [vmem:[#allocation5 + $0x288] sm:$0xff]
    %v187 = vld [vmem:[#allocation5 + $0x290] sm:$0xff]
    %v188 = vld [vmem:[#allocation5 + $0x298] sm:$0xff]
    %v189 = vld [vmem:[#allocation5 + $0x2a0] sm:$0xff]
    %v190 = vld [vmem:[#allocation5 + $0x2a8] sm:$0xff]
    %v191 = vld [vmem:[#allocation5 + $0x2b0] sm:$0xff]
    %v192 = vld [vmem:[#allocation5 + $0x2b8] sm:$0xff]
    %v193 = vld [vmem:[#allocation5 + $0x2c0] sm:$0xff]
    %v194 = vld [vmem:[#allocation5 + $0x2c8] sm:$0xff]
    %v195 = vld [vmem:[#allocation5 + $0x2d0] sm:$0xff]
    %v196 = vld [vmem:[#allocation5 + $0x2d8] sm:$0xff]
    %v197 = vld [vmem:[#allocation5 + $0x2e0] sm:$0xff]
    %v198 = vld [vmem:[#allocation5 + $0x2e8] sm:$0xff]
    %v199 = vld [vmem:[#allocation5 + $0x2f0] sm:$0xff]
    %v200 = vld [vmem:[#allocation5 + $0x2f8] sm:$0xff]
    %v201 = vld [vmem:[#allocation5 + $0x300] sm:$0xff]
    %v202 = vld [vmem:[#allocation5 + $0x308] sm:$0xff]
    %v203 = vld [vmem:[#allocation5 + $0x310] sm:$0xff]
    %v204 = vld [vmem:[#allocation5 + $0x318] sm:$0xff]
    %v205 = vld [vmem:[#allocation5 + $0x320] sm:$0xff]
    %v206 = vld [vmem:[#allocation5 + $0x328] sm:$0xff]
    %v207 = vld [vmem:[#allocation5 + $0x330] sm:$0xff]
    %v208 = vld [vmem:[#allocation5 + $0x338] sm:$0xff]
    %v209 = vld [vmem:[#allocation5 + $0x340] sm:$0xff]
    %v210 = vld [vmem:[#allocation5 + $0x348] sm:$0xff]
    %v211 = vld [vmem:[#allocation5 + $0x350] sm:$0xff]
    %v212 = vld [vmem:[#allocation5 + $0x358] sm:$0xff]
    %v213 = vld [vmem:[#allocation5 + $0x360] sm:$0xff]
    %v214 = vld [vmem:[#allocation5 + $0x368] sm:$0xff]
    %v215 = vld [vmem:[#allocation5 + $0x370] sm:$0xff]
    %v216 = vld [vmem:[#allocation5 + $0x378] sm:$0xff]
    %v217 = vld [vmem:[#allocation5 + $0x380] sm:$0xff]
    %v218 = vld [vmem:[#allocation5 + $0x388] sm:$0xff]
    %v219 = vld [vmem:[#allocation5 + $0x390] sm:$0xff]
    %v220 = vld [vmem:[#allocation5 + $0x398] sm:$0xff]
    %v221 = vld [vmem:[#allocation5 + $0x3a0] sm:$0xff]
    %v222 = vld [vmem:[#allocation5 + $0x3a8] sm:$0xff]
    %v223 = vld [vmem:[#allocation5 + $0x3b0] sm:$0xff]
    %v224 = vld [vmem:[#allocation5 + $0x3b8] sm:$0xff]
    %v225 = vld [vmem:[#allocation5 + $0x3c0] sm:$0xff]
    %v226 = vld [vmem:[#allocation5 + $0x3c8] sm:$0xff]
    %v227 = vld [vmem:[#allocation5 + $0x3d0] sm:$0xff]
    %v228 = vld [vmem:[#allocation5 + $0x3d8] sm:$0xff]
    %v229 = vld [vmem:[#allocation5 + $0x3e0] sm:$0xff]
    %v230 = vld [vmem:[#allocation5 + $0x3e8] sm:$0xff]
    %v231 = vld [vmem:[#allocation5 + $0x3f0] sm:$0xff]
    %v232 = vld [vmem:[#allocation5 + $0x3f8] sm:$0xff]
    %v233 = vld [vmem:[#allocation5 + $0x400] sm:$0xff]
    %v234 = vld [vmem:[#allocation5 + $0x408] sm:$0xff]
    %v235 = vld [vmem:[#allocation5 + $0x410] sm:$0xff]
    %v236 = vld [vmem:[#allocation5 + $0x418] sm:$0xff]
    %v237 = vld [vmem:[#allocation5 + $0x420] sm:$0xff]
    %v238 = vld [vmem:[#allocation5 + $0x428] sm:$0xff]
    %v239 = vld [vmem:[#allocation5 + $0x430] sm:$0xff]
    %v240 = vld [vmem:[#allocation5 + $0x438] sm:$0xff]
    %v241 = vld [vmem:[#allocation5 + $0x440] sm:$0xff]
    %v242 = vld [vmem:[#allocation5 + $0x448] sm:$0xff]
    %v243 = vld [vmem:[#allocation5 + $0x450] sm:$0xff]
    %v244 = vld [vmem:[#allocation5 + $0x458] sm:$0xff]
    %v245 = vld [vmem:[#allocation5 + $0x460] sm:$0xff]
    %v246 = vld [vmem:[#allocation5 + $0x468] sm:$0xff]
    %v247 = vld [vmem:[#allocation5 + $0x470] sm:$0xff]
    %v248 = vld [vmem:[#allocation5 + $0x478] sm:$0xff]
    %v249 = vld [vmem:[#allocation5 + $0x480] sm:$0xff]
    %v250 = vld [vmem:[#allocation5 + $0x488] sm:$0xff]
    %v251 = vld [vmem:[#allocation5 + $0x490] sm:$0xff]
    %v252 = vld [vmem:[#allocation5 + $0x498] sm:$0xff]
    %v253 = vld [vmem:[#allocation5 + $0x4a0] sm:$0xff]
    %v254 = vld [vmem:[#allocation5 + $0x4a8] sm:$0xff]
    %v255 = vld [vmem:[#allocation5 + $0x4b0] sm:$0xff]
    %v256 = vld [vmem:[#allocation5 + $0x4b8] sm:$0xff]
    %v257 = vld [vmem:[#allocation5 + $0x4c0] sm:$0xff]
    %v258 = vld [vmem:[#allocation5 + $0x4c8] sm:$0xff]
    %v259 = vld [vmem:[#allocation5 + $0x4d0] sm:$0xff]
    %v260 = vld [vmem:[#allocation5 + $0x4d8] sm:$0xff]
    %v261 = vld [vmem:[#allocation5 + $0x4e0] sm:$0xff]
    %v262 = vld [vmem:[#allocation5 + $0x4e8] sm:$0xff]
    %v263 = vld [vmem:[#allocation5 + $0x4f0] sm:$0xff]
    %v264 = vld [vmem:[#allocation5 + $0x4f8] sm:$0xff]
    %v265 = vld [vmem:[#allocation5 + $0x500] sm:$0xff]
    %v266 = vld [vmem:[#allocation5 + $0x508] sm:$0xff]
    %v267 = vld [vmem:[#allocation5 + $0x510] sm:$0xff]
    %v268 = vld [vmem:[#allocation5 + $0x518] sm:$0xff]
    %v269 = vld [vmem:[#allocation5 + $0x520] sm:$0xff]
    %v270 = vld [vmem:[#allocation5 + $0x528] sm:$0xff]
    %v271 = vld [vmem:[#allocation5 + $0x530] sm:$0xff]
    %v272 = vld [vmem:[#allocation5 + $0x538] sm:$0xff]
    %v273 = vld [vmem:[#allocation5 + $0x540] sm:$0xff]
    %v274 = vld [vmem:[#allocation5 + $0x548] sm:$0xff]
    %v275 = vld [vmem:[#allocation5 + $0x550] sm:$0xff]
    %v276 = vld [vmem:[#allocation5 + $0x558] sm:$0xff]
    %v277 = vld [vmem:[#allocation5 + $0x560] sm:$0xff]
    %v278 = vld [vmem:[#allocation5 + $0x568] sm:$0xff]
    %v279 = vld [vmem:[#allocation5 + $0x570] sm:$0xff]
    %v280 = vld [vmem:[#allocation5 + $0x578] sm:$0xff]
    %v281 = vld [vmem:[#allocation5 + $0x580] sm:$0xff]
    %v282 = vld [vmem:[#allocation5 + $0x588] sm:$0xff]
    %v283 = vld [vmem:[#allocation5 + $0x590] sm:$0xff]
    %v284 = vld [vmem:[#allocation5 + $0x598] sm:$0xff]
    %v285 = vld [vmem:[#allocation5 + $0x5a0] sm:$0xff]
    %v286 = vld [vmem:[#allocation5 + $0x5a8] sm:$0xff]
    %v287 = vld [vmem:[#allocation5 + $0x5b0] sm:$0xff]
    %v288 = vld [vmem:[#allocation5 + $0x5b8] sm:$0xff]
    %v289 = vld [vmem:[#allocation5 + $0x5c0] sm:$0xff]
    %v290 = vld [vmem:[#allocation5 + $0x5c8] sm:$0xff]
    %v291 = vld [vmem:[#allocation5 + $0x5d0] sm:$0xff]
    %v292 = vld [vmem:[#allocation5 + $0x5d8] sm:$0xff]
    %v293 = vld [vmem:[#allocation5 + $0x5e0] sm:$0xff]
    %v294 = vld [vmem:[#allocation5 + $0x5e8] sm:$0xff]
    %v295 = vld [vmem:[#allocation5 + $0x5f0] sm:$0xff]
    %v296 = vld [vmem:[#allocation5 + $0x5f8] sm:$0xff]
    %v297 = vld [vmem:[#allocation5 + $0x600] sm:$0xff]
    %v298 = vld [vmem:[#allocation5 + $0x608] sm:$0xff]
    %v299 = vld [vmem:[#allocation5 + $0x610] sm:$0xff]
    %v300 = vld [vmem:[#allocation5 + $0x618] sm:$0xff]
    %v301 = vld [vmem:[#allocation5 + $0x620] sm:$0xff]
    %v302 = vld [vmem:[#allocation5 + $0x628] sm:$0xff]
    %v303 = vld [vmem:[#allocation5 + $0x630] sm:$0xff]
    %v304 = vld [vmem:[#allocation5 + $0x638] sm:$0xff]
    %v305 = vld [vmem:[#allocation5 + $0x640] sm:$0xff]
    %v306 = vld [vmem:[#allocation5 + $0x648] sm:$0xff]
    %v307 = vld [vmem:[#allocation5 + $0x650] sm:$0xff]
    %v308 = vld [vmem:[#allocation5 + $0x658] sm:$0xff]
    %v309 = vld [vmem:[#allocation5 + $0x660] sm:$0xff]
    %v310 = vld [vmem:[#allocation5 + $0x668] sm:$0xff]
    %v311 = vld [vmem:[#allocation5 + $0x670] sm:$0xff]
    %v312 = vld [vmem:[#allocation5 + $0x678] sm:$0xff]
    %v313 = vld [vmem:[#allocation5 + $0x680] sm:$0xff]
    %v314 = vld [vmem:[#allocation5 + $0x688] sm:$0xff]
    %v315 = vld [vmem:[#allocation5 + $0x690] sm:$0xff]
    %v316 = vld [vmem:[#allocation5 + $0x698] sm:$0xff]
    %v317 = vld [vmem:[#allocation5 + $0x6a0] sm:$0xff]
    %v318 = vld [vmem:[#allocation5 + $0x6a8] sm:$0xff]
    %v319 = vld [vmem:[#allocation5 + $0x6b0] sm:$0xff]
    %v320 = vld [vmem:[#allocation5 + $0x6b8] sm:$0xff]
    %v321 = vld [vmem:[#allocation5 + $0x6c0] sm:$0xff]
    %v322 = vld [vmem:[#allocation5 + $0x6c8] sm:$0xff]
    %v323 = vld [vmem:[#allocation5 + $0x6d0] sm:$0xff]
    %v324 = vld [vmem:[#allocation5 + $0x6d8] sm:$0xff]
    %v325 = vld [vmem:[#allocation5 + $0x6e0] sm:$0xff]
    %v326 = vld [vmem:[#allocation5 + $0x6e8] sm:$0xff]
    %v327 = vld [vmem:[#allocation5 + $0x6f0] sm:$0xff]
    %v328 = vld [vmem:[#allocation5 + $0x6f8] sm:$0xff]
    %v329 = vld [vmem:[#allocation5 + $0x700] sm:$0xff]
    %v330 = vld [vmem:[#allocation5 + $0x708] sm:$0xff]
    %v331 = vld [vmem:[#allocation5 + $0x710] sm:$0xff]
    %v332 = vld [vmem:[#allocation5 + $0x718] sm:$0xff]
    %v333 = vld [vmem:[#allocation5 + $0x720] sm:$0xff]
    %v334 = vld [vmem:[#allocation5 + $0x728] sm:$0xff]
    %v335 = vld [vmem:[#allocation5 + $0x730] sm:$0xff]
    %v336 = vld [vmem:[#allocation5 + $0x738] sm:$0xff]
    %v337 = vld [vmem:[#allocation5 + $0x740] sm:$0xff]
    %v338 = vld [vmem:[#allocation5 + $0x748] sm:$0xff]
    %v339 = vld [vmem:[#allocation5 + $0x750] sm:$0xff]
    %v340 = vld [vmem:[#allocation5 + $0x758] sm:$0xff]
    %v341 = vld [vmem:[#allocation5 + $0x760] sm:$0xff]
    %v342 = vld [vmem:[#allocation5 + $0x768] sm:$0xff]
    %v343 = vld [vmem:[#allocation5 + $0x770] sm:$0xff]
    %v344 = vld [vmem:[#allocation5 + $0x778] sm:$0xff]
    %v345 = vld [vmem:[#allocation5 + $0x780] sm:$0xff]
    %v346 = vld [vmem:[#allocation5 + $0x788] sm:$0xff]
    %v347 = vld [vmem:[#allocation5 + $0x790] sm:$0xff]
    %v348 = vld [vmem:[#allocation5 + $0x798] sm:$0xff]
    %v349 = vld [vmem:[#allocation5 + $0x7a0] sm:$0xff]
    %v350 = vld [vmem:[#allocation5 + $0x7a8] sm:$0xff]
    %v351 = vld [vmem:[#allocation5 + $0x7b0] sm:$0xff]
    %v352 = vld [vmem:[#allocation5 + $0x7b8] sm:$0xff]
    %v353 = vld [vmem:[#allocation5 + $0x7c0] sm:$0xff]
    %v354 = vld [vmem:[#allocation5 + $0x7c8] sm:$0xff]
    %v355 = vld [vmem:[#allocation5 + $0x7d0] sm:$0xff]
    %v356 = vld [vmem:[#allocation5 + $0x7d8] sm:$0xff]
    %v357 = vld [vmem:[#allocation5 + $0x7e0] sm:$0xff]
    %v358 = vld [vmem:[#allocation5 + $0x7e8] sm:$0xff]
    %v359 = vld [vmem:[#allocation5 + $0x7f0] sm:$0xff]
    %v360 = vld [vmem:[#allocation5 + $0x7f8] sm:$0xff]
    %v361 = vld [vmem:[#allocation5 + $0x800] sm:$0xff]
    %v362 = vld [vmem:[#allocation5 + $0x808] sm:$0xff]
    %v363 = vld [vmem:[#allocation5 + $0x810] sm:$0xff]
    %v364 = vld [vmem:[#allocation5 + $0x818] sm:$0xff]
    %v365 = vld [vmem:[#allocation5 + $0x820] sm:$0xff]
    %v366 = vld [vmem:[#allocation5 + $0x828] sm:$0xff]
    %v367 = vld [vmem:[#allocation5 + $0x830] sm:$0xff]
    %v368 = vld [vmem:[#allocation5 + $0x838] sm:$0xff]
    %v369 = vld [vmem:[#allocation5 + $0x840] sm:$0xff]
    %v370 = vld [vmem:[#allocation5 + $0x848] sm:$0xff]
    %v371 = vld [vmem:[#allocation5 + $0x850] sm:$0xff]
    %v372 = vld [vmem:[#allocation5 + $0x858] sm:$0xff]
    %v373 = vld [vmem:[#allocation5 + $0x860] sm:$0xff]
    %v374 = vld [vmem:[#allocation5 + $0x868] sm:$0xff]
    %v375 = vld [vmem:[#allocation5 + $0x870] sm:$0xff]
    %v376 = vld [vmem:[#allocation5 + $0x878] sm:$0xff]
    %v377 = vld [vmem:[#allocation5 + $0x880] sm:$0xff]
    %v378 = vld [vmem:[#allocation5 + $0x888] sm:$0xff]
    %v379 = vld [vmem:[#allocation5 + $0x890] sm:$0xff]
    %v380 = vld [vmem:[#allocation5 + $0x898] sm:$0xff]
    %v381 = vld [vmem:[#allocation5 + $0x8a0] sm:$0xff]
    %v382 = vld [vmem:[#allocation5 + $0x8a8] sm:$0xff]
    %v383 = vld [vmem:[#allocation5 + $0x8b0] sm:$0xff]
    %v384 = vld [vmem:[#allocation5 + $0x8b8] sm:$0xff]
    %v385 = vld [vmem:[#allocation5 + $0x8c0] sm:$0xff]
    %v386 = vld [vmem:[#allocation5 + $0x8c8] sm:$0xff]
    %v387 = vld [vmem:[#allocation5 + $0x8d0] sm:$0xff]
    %v388 = vld [vmem:[#allocation5 + $0x8d8] sm:$0xff]
    %v389 = vld [vmem:[#allocation5 + $0x8e0] sm:$0xff]
    %v390 = vld [vmem:[#allocation5 + $0x8e8] sm:$0xff]
    %v391 = vld [vmem:[#allocation5 + $0x8f0] sm:$0xff]
    %v392 = vld [vmem:[#allocation5 + $0x8f8] sm:$0xff]
    %v393 = vld [vmem:[#allocation5 + $0x900] sm:$0xff]
    %v394 = vld [vmem:[#allocation5 + $0x908] sm:$0xff]
    %v395 = vld [vmem:[#allocation5 + $0x910] sm:$0xff]
    %v396 = vld [vmem:[#allocation5 + $0x918] sm:$0xff]
    %v397 = vld [vmem:[#allocation5 + $0x920] sm:$0xff]
    %v398 = vld [vmem:[#allocation5 + $0x928] sm:$0xff]
    %v399 = vld [vmem:[#allocation5 + $0x930] sm:$0xff]
    %v400 = vld [vmem:[#allocation5 + $0x938] sm:$0xff]
    %v401 = vld [vmem:[#allocation5 + $0x940] sm:$0xff]
    %v402 = vld [vmem:[#allocation5 + $0x948] sm:$0xff]
    %v403 = vld [vmem:[#allocation5 + $0x950] sm:$0xff]
    %v404 = vld [vmem:[#allocation5 + $0x958] sm:$0xff]
    %v405 = vld [vmem:[#allocation5 + $0x960] sm:$0xff]
    %v406 = vld [vmem:[#allocation5 + $0x968] sm:$0xff]
    %v407 = vld [vmem:[#allocation5 + $0x970] sm:$0xff]
    %v408 = vld [vmem:[#allocation5 + $0x978] sm:$0xff]
    %v409 = vld [vmem:[#allocation5 + $0x980] sm:$0xff]
    %v410 = vld [vmem:[#allocation5 + $0x988] sm:$0xff]
    %v411 = vld [vmem:[#allocation5 + $0x990] sm:$0xff]
    %v412 = vld [vmem:[#allocation5 + $0x998] sm:$0xff]
    %v413 = vld [vmem:[#allocation5 + $0x9a0] sm:$0xff]
    %v414 = vld [vmem:[#allocation5 + $0x9a8] sm:$0xff]
    %v415 = vld [vmem:[#allocation5 + $0x9b0] sm:$0xff]
    %v416 = vld [vmem:[#allocation5 + $0x9b8] sm:$0xff]
    %v417 = vld [vmem:[#allocation5 + $0x9c0] sm:$0xff]
    %v418 = vld [vmem:[#allocation5 + $0x9c8] sm:$0xff]
    %v419 = vld [vmem:[#allocation5 + $0x9d0] sm:$0xff]
    %v420 = vld [vmem:[#allocation5 + $0x9d8] sm:$0xff]
    %v421 = vld [vmem:[#allocation5 + $0x9e0] sm:$0xff]
    %v422 = vld [vmem:[#allocation5 + $0x9e8] sm:$0xff]
    %v423 = vld [vmem:[#allocation5 + $0x9f0] sm:$0xff]
    %v424 = vld [vmem:[#allocation5 + $0x9f8] sm:$0xff]
    %v425 = vld [vmem:[#allocation5 + $0xa00] sm:$0xff]
    %v426 = vld [vmem:[#allocation5 + $0xa08] sm:$0xff]
    %v427 = vld [vmem:[#allocation5 + $0xa10] sm:$0xff]
    %v428 = vld [vmem:[#allocation5 + $0xa18] sm:$0xff]
    %v429 = vld [vmem:[#allocation5 + $0xa20] sm:$0xff]
    %v430 = vld [vmem:[#allocation5 + $0xa28] sm:$0xff]
    %v431 = vld [vmem:[#allocation5 + $0xa30] sm:$0xff]
    %v432 = vld [vmem:[#allocation5 + $0xa38] sm:$0xff]
    %v433 = vld [vmem:[#allocation5 + $0xa40] sm:$0xff]
    %v434 = vld [vmem:[#allocation5 + $0xa48] sm:$0xff]
    %v435 = vld [vmem:[#allocation5 + $0xa50] sm:$0xff]
    %v436 = vld [vmem:[#allocation5 + $0xa58] sm:$0xff]
    %v437 = vld [vmem:[#allocation5 + $0xa60] sm:$0xff]
    %v438 = vld [vmem:[#allocation5 + $0xa68] sm:$0xff]
    %v439 = vld [vmem:[#allocation5 + $0xa70] sm:$0xff]
    %v440 = vld [vmem:[#allocation5 + $0xa78] sm:$0xff]
    %v441 = vld [vmem:[#allocation5 + $0xa80] sm:$0xff]
    %v442 = vld [vmem:[#allocation5 + $0xa88] sm:$0xff]
    %v443 = vld [vmem:[#allocation5 + $0xa90] sm:$0xff]
    %v444 = vld [vmem:[#allocation5 + $0xa98] sm:$0xff]
    %v445 = vld [vmem:[#allocation5 + $0xaa0] sm:$0xff]
    %v446 = vld [vmem:[#allocation5 + $0xaa8] sm:$0xff]
    %v447 = vld [vmem:[#allocation5 + $0xab0] sm:$0xff]
    %v448 = vld [vmem:[#allocation5 + $0xab8] sm:$0xff]
    %v449 = vld [vmem:[#allocation5 + $0xac0] sm:$0xff]
    %v450 = vld [vmem:[#allocation5 + $0xac8] sm:$0xff]
    %v451 = vld [vmem:[#allocation5 + $0xad0] sm:$0xff]
    %v452 = vld [vmem:[#allocation5 + $0xad8] sm:$0xff]
    %v453 = vld [vmem:[#allocation5 + $0xae0] sm:$0xff]
    %v454 = vld [vmem:[#allocation5 + $0xae8] sm:$0xff]
    %v455 = vld [vmem:[#allocation5 + $0xaf0] sm:$0xff]
    %v456 = vld [vmem:[#allocation5 + $0xaf8] sm:$0xff]
    %v457 = vld [vmem:[#allocation5 + $0xb00] sm:$0xff]
    %v458 = vld [vmem:[#allocation5 + $0xb08] sm:$0xff]
    %v459 = vld [vmem:[#allocation5 + $0xb10] sm:$0xff]
    %v460 = vld [vmem:[#allocation5 + $0xb18] sm:$0xff]
    %v461 = vld [vmem:[#allocation5 + $0xb20] sm:$0xff]
    %v462 = vld [vmem:[#allocation5 + $0xb28] sm:$0xff]
    %v463 = vld [vmem:[#allocation5 + $0xb30] sm:$0xff]
    %v464 = vld [vmem:[#allocation5 + $0xb38] sm:$0xff]
    %v465 = vld [vmem:[#allocation5 + $0xb40] sm:$0xff]
    %v466 = vld [vmem:[#allocation5 + $0xb48] sm:$0xff]
    %v467 = vld [vmem:[#allocation5 + $0xb50] sm:$0xff]
    %v468 = vld [vmem:[#allocation5 + $0xb58] sm:$0xff]
    %v469 = vld [vmem:[#allocation5 + $0xb60] sm:$0xff]
    %v470 = vld [vmem:[#allocation5 + $0xb68] sm:$0xff]
    %v471 = vld [vmem:[#allocation5 + $0xb70] sm:$0xff]
    %v472 = vld [vmem:[#allocation5 + $0xb78] sm:$0xff]
    %v473 = vld [vmem:[#allocation5 + $0xb80] sm:$0xff]
    %v474 = vld [vmem:[#allocation5 + $0xb88] sm:$0xff]
    %v475 = vld [vmem:[#allocation5 + $0xb90] sm:$0xff]
    %v476 = vld [vmem:[#allocation5 + $0xb98] sm:$0xff]
    %v477 = vld [vmem:[#allocation5 + $0xba0] sm:$0xff]
    %v478 = vld [vmem:[#allocation5 + $0xba8] sm:$0xff]
    %v479 = vld [vmem:[#allocation5 + $0xbb0] sm:$0xff]
    %v480 = vld [vmem:[#allocation5 + $0xbb8] sm:$0xff]
    %v481 = vld [vmem:[#allocation5 + $0xbc0] sm:$0xff]
    %v482 = vld [vmem:[#allocation5 + $0xbc8] sm:$0xff]
    %v483 = vld [vmem:[#allocation5 + $0xbd0] sm:$0xff]
    %v484 = vld [vmem:[#allocation5 + $0xbd8] sm:$0xff]
    %v485 = vld [vmem:[#allocation5 + $0xbe0] sm:$0xff]
    %v486 = vld [vmem:[#allocation5 + $0xbe8] sm:$0xff]
    %v487 = vld [vmem:[#allocation5 + $0xbf0] sm:$0xff]
    %v488 = vld [vmem:[#allocation5 + $0xbf8] sm:$0xff]
    %v489 = vld [vmem:[#allocation5 + $0xc00] sm:$0xff]
    %v490 = vld [vmem:[#allocation5 + $0xc08] sm:$0xff]
    %v491 = vld [vmem:[#allocation5 + $0xc10] sm:$0xff]
    %v492 = vld [vmem:[#allocation5 + $0xc18] sm:$0xff]
    %v493 = vld [vmem:[#allocation5 + $0xc20] sm:$0xff]
    %v494 = vld [vmem:[#allocation5 + $0xc28] sm:$0xff]
    %v495 = vld [vmem:[#allocation5 + $0xc30] sm:$0xff]
    %v496 = vld [vmem:[#allocation5 + $0xc38] sm:$0xff]
    %v497 = vld [vmem:[#allocation5 + $0xc40] sm:$0xff]
    %v498 = vld [vmem:[#allocation5 + $0xc48] sm:$0xff]
    %v499 = vld [vmem:[#allocation5 + $0xc50] sm:$0xff]
    %v500 = vld [vmem:[#allocation5 + $0xc58] sm:$0xff]
    %v501 = vld [vmem:[#allocation5 + $0xc60] sm:$0xff]
    %v502 = vld [vmem:[#allocation5 + $0xc68] sm:$0xff]
    %v503 = vld [vmem:[#allocation5 + $0xc70] sm:$0xff]
    %v504 = vld [vmem:[#allocation5 + $0xc78] sm:$0xff]
    %v505 = vld [vmem:[#allocation7] sm:$0x1f]
    %v507 = vperm.slane %v505, 0
    %v508 = vperm.slane %v505, 1
    %v509 = vperm.slane %v505, 2
    %v510 = vperm.slane %v505, 3
    %v511 = vperm.slane %v505, 4
    %517 = vmatpush.msra.mxu0 %v180
    %518 = vmatpush.msra.mxu0 %v175
    %519 = vmatpush.msra.mxu0 %v170
    %520 = vmatpush.msra.mxu0 %v165
    %521 = vmatpush.msra.mxu0 %v160
    %522 = vmatpush.msra.mxu0 %v155
    %523 = vmatpush.msra.mxu0 %v150
    %524 = vmatpush.msra.mxu0 %v145
    %525 = vmatpush.msra.mxu0 %v140
    %526 = vmatpush.msra.mxu0 %v135
    %527 = vmatpush.msra.mxu0 %v130
    %528 = vmatpush.msra.mxu0 %v125
    %529 = vmatpush.msra.mxu0 %v120
    %530 = vmatpush.msra.mxu0 %v115
    %531 = vmatpush.msra.mxu0 %v110
    %532 = vmatpush.msra.mxu0 %v105
    %533 = vmatmul.f32.gmra.mxu0 %v95
    %v534 = vpop.f32.mrf.mxu0
    %v535 = vadd.f32 %v507, %v534
    %536 = vmatmul.f32.gmra.mxu0 %v100
    %v537 = vpop.f32.mrf.mxu0
    %v538 = vadd.f32 %v507, %v537
    %539 = vdwg.mxu0
    %540 = vmatpush.msra.mxu0 %v260
    %541 = vmatpush.msra.mxu0 %v255
    %542 = vmatpush.msra.mxu0 %v250
    %543 = vmatpush.msra.mxu0 %v245
    %544 = vmatpush.msra.mxu0 %v240
    %545 = vmatpush.msra.mxu0 %v235
    %546 = vmatpush.msra.mxu0 %v230
    %547 = vmatpush.msra.mxu0 %v225
    %548 = vmatpush.msra.mxu0 %v220
    %549 = vmatpush.msra.mxu0 %v215
    %550 = vmatpush.msra.mxu0 %v210
    %551 = vmatpush.msra.mxu0 %v205
    %552 = vmatpush.msra.mxu0 %v200
    %553 = vmatpush.msra.mxu0 %v195
    %554 = vmatpush.msra.mxu0 %v190
    %555 = vmatpush.msra.mxu0 %v185
    %556 = vmatmul.f32.gmra.mxu0 %v96
    %v557 = vpop.f32.mrf.mxu0
    %v558 = vadd.f32 %v535, %v557
    %559 = vmatmul.f32.gmra.mxu0 %v101
    %v560 = vpop.f32.mrf.mxu0
    %v561 = vadd.f32 %v538, %v560
    %562 = vdwg.mxu0
    %563 = vmatpush.msra.mxu0 %v340
    %564 = vmatpush.msra.mxu0 %v335
    %565 = vmatpush.msra.mxu0 %v330
    %566 = vmatpush.msra.mxu0 %v325
    %567 = vmatpush.msra.mxu0 %v320
    %568 = vmatpush.msra.mxu0 %v315
    %569 = vmatpush.msra.mxu0 %v310
    %570 = vmatpush.msra.mxu0 %v305
    %571 = vmatpush.msra.mxu0 %v300
    %572 = vmatpush.msra.mxu0 %v295
    %573 = vmatpush.msra.mxu0 %v290
    %574 = vmatpush.msra.mxu0 %v285
    %575 = vmatpush.msra.mxu0 %v280
    %576 = vmatpush.msra.mxu0 %v275
    %577 = vmatpush.msra.mxu0 %v270
    %578 = vmatpush.msra.mxu0 %v265
    %579 = vmatmul.f32.gmra.mxu0 %v97
    %v580 = vpop.f32.mrf.mxu0
    %v581 = vadd.f32 %v558, %v580
    %582 = vmatmul.f32.gmra.mxu0 %v102
    %v583 = vpop.f32.mrf.mxu0
    %v584 = vadd.f32 %v561, %v583
    %585 = vdwg.mxu0
    %586 = vmatpush.msra.mxu0 %v420
    %587 = vmatpush.msra.mxu0 %v415
    %588 = vmatpush.msra.mxu0 %v410
    %589 = vmatpush.msra.mxu0 %v405
    %590 = vmatpush.msra.mxu0 %v400
    %591 = vmatpush.msra.mxu0 %v395
    %592 = vmatpush.msra.mxu0 %v390
    %593 = vmatpush.msra.mxu0 %v385
    %594 = vmatpush.msra.mxu0 %v380
    %595 = vmatpush.msra.mxu0 %v375
    %596 = vmatpush.msra.mxu0 %v370
    %597 = vmatpush.msra.mxu0 %v365
    %598 = vmatpush.msra.mxu0 %v360
    %599 = vmatpush.msra.mxu0 %v355
    %600 = vmatpush.msra.mxu0 %v350
    %601 = vmatpush.msra.mxu0 %v345
    %602 = vmatmul.f32.gmra.mxu0 %v98
    %v603 = vpop.f32.mrf.mxu0
    %v604 = vadd.f32 %v581, %v603
    %605 = vmatmul.f32.gmra.mxu0 %v103
    %v606 = vpop.f32.mrf.mxu0
    %v607 = vadd.f32 %v584, %v606
    %608 = vdwg.mxu0
    %609 = vmatpush.msra.mxu0 %v500
    %610 = vmatpush.msra.mxu0 %v495
    %611 = vmatpush.msra.mxu0 %v490
    %612 = vmatpush.msra.mxu0 %v485
    %613 = vmatpush.msra.mxu0 %v480
    %614 = vmatpush.msra.mxu0 %v475
    %615 = vmatpush.msra.mxu0 %v470
    %616 = vmatpush.msra.mxu0 %v465
    %617 = vmatpush.msra.mxu0 %v460
    %618 = vmatpush.msra.mxu0 %v455
    %619 = vmatpush.msra.mxu0 %v450
    %620 = vmatpush.msra.mxu0 %v445
    %621 = vmatpush.msra.mxu0 %v440
    %622 = vmatpush.msra.mxu0 %v435
    %623 = vmatpush.msra.mxu0 %v430
    %624 = vmatpush.msra.mxu0 %v425
    %625 = vmatmul.f32.gmra.mxu0 %v99
    %v626 = vpop.f32.mrf.mxu0
    %v627 = vadd.f32 %v604, %v626
    %628 = vmatmul.f32.gmra.mxu0 %v104
    %v629 = vpop.f32.mrf.mxu0
    %v630 = vadd.f32 %v607, %v629
    %631 = vdwg.mxu0
    %632 = vmatpush.msra.mxu0 %v181
    %633 = vmatpush.msra.mxu0 %v176
    %634 = vmatpush.msra.mxu0 %v171
    %635 = vmatpush.msra.mxu0 %v166
    %636 = vmatpush.msra.mxu0 %v161
    %637 = vmatpush.msra.mxu0 %v156
    %638 = vmatpush.msra.mxu0 %v151
    %639 = vmatpush.msra.mxu0 %v146
    %640 = vmatpush.msra.mxu0 %v141
    %641 = vmatpush.msra.mxu0 %v136
    %642 = vmatpush.msra.mxu0 %v131
    %643 = vmatpush.msra.mxu0 %v126
    %644 = vmatpush.msra.mxu0 %v121
    %645 = vmatpush.msra.mxu0 %v116
    %646 = vmatpush.msra.mxu0 %v111
    %647 = vmatpush.msra.mxu0 %v106
    %648 = vmatmul.f32.gmra.mxu0 %v95
    %v649 = vpop.f32.mrf.mxu0
    %v650 = vadd.f32 %v508, %v649
    %651 = vmatmul.f32.gmra.mxu0 %v100
    %v652 = vpop.f32.mrf.mxu0
    %v653 = vadd.f32 %v508, %v652
    %654 = vdwg.mxu0
    %655 = vmatpush.msra.mxu0 %v261
    %656 = vmatpush.msra.mxu0 %v256
    %657 = vmatpush.msra.mxu0 %v251
    %658 = vmatpush.msra.mxu0 %v246
    %659 = vmatpush.msra.mxu0 %v241
    %660 = vmatpush.msra.mxu0 %v236
    %661 = vmatpush.msra.mxu0 %v231
    %662 = vmatpush.msra.mxu0 %v226
    %663 = vmatpush.msra.mxu0 %v221
    %664 = vmatpush.msra.mxu0 %v216
    %665 = vmatpush.msra.mxu0 %v211
    %666 = vmatpush.msra.mxu0 %v206
    %667 = vmatpush.msra.mxu0 %v201
    %668 = vmatpush.msra.mxu0 %v196
    %669 = vmatpush.msra.mxu0 %v191
    %670 = vmatpush.msra.mxu0 %v186
    %671 = vmatmul.f32.gmra.mxu0 %v96
    %v672 = vpop.f32.mrf.mxu0
    %v673 = vadd.f32 %v650, %v672
    %674 = vmatmul.f32.gmra.mxu0 %v101
    %v675 = vpop.f32.mrf.mxu0
    %v676 = vadd.f32 %v653, %v675
    %677 = vdwg.mxu0
    %678 = vmatpush.msra.mxu0 %v341
    %679 = vmatpush.msra.mxu0 %v336
    %680 = vmatpush.msra.mxu0 %v331
    %681 = vmatpush.msra.mxu0 %v326
    %682 = vmatpush.msra.mxu0 %v321
    %683 = vmatpush.msra.mxu0 %v316
    %684 = vmatpush.msra.mxu0 %v311
    %685 = vmatpush.msra.mxu0 %v306
    %686 = vmatpush.msra.mxu0 %v301
    %687 = vmatpush.msra.mxu0 %v296
    %688 = vmatpush.msra.mxu0 %v291
    %689 = vmatpush.msra.mxu0 %v286
    %690 = vmatpush.msra.mxu0 %v281
    %691 = vmatpush.msra.mxu0 %v276
    %692 = vmatpush.msra.mxu0 %v271
    %693 = vmatpush.msra.mxu0 %v266
    %694 = vmatmul.f32.gmra.mxu0 %v97
    %v695 = vpop.f32.mrf.mxu0
    %v696 = vadd.f32 %v673, %v695
    %697 = vmatmul.f32.gmra.mxu0 %v102
    %v698 = vpop.f32.mrf.mxu0
    %v699 = vadd.f32 %v676, %v698
    %700 = vdwg.mxu0
    %701 = vmatpush.msra.mxu0 %v421
    %702 = vmatpush.msra.mxu0 %v416
    %703 = vmatpush.msra.mxu0 %v411
    %704 = vmatpush.msra.mxu0 %v406
    %705 = vmatpush.msra.mxu0 %v401
    %706 = vmatpush.msra.mxu0 %v396
    %707 = vmatpush.msra.mxu0 %v391
    %708 = vmatpush.msra.mxu0 %v386
    %709 = vmatpush.msra.mxu0 %v381
    %710 = vmatpush.msra.mxu0 %v376
    %711 = vmatpush.msra.mxu0 %v371
    %712 = vmatpush.msra.mxu0 %v366
    %713 = vmatpush.msra.mxu0 %v361
    %714 = vmatpush.msra.mxu0 %v356
    %715 = vmatpush.msra.mxu0 %v351
    %716 = vmatpush.msra.mxu0 %v346
    %717 = vmatmul.f32.gmra.mxu0 %v98
    %v718 = vpop.f32.mrf.mxu0
    %v719 = vadd.f32 %v696, %v718
    %720 = vmatmul.f32.gmra.mxu0 %v103
    %v721 = vpop.f32.mrf.mxu0
    %v722 = vadd.f32 %v699, %v721
    %723 = vdwg.mxu0
    %724 = vmatpush.msra.mxu0 %v501
    %725 = vmatpush.msra.mxu0 %v496
    %726 = vmatpush.msra.mxu0 %v491
    %727 = vmatpush.msra.mxu0 %v486
    %728 = vmatpush.msra.mxu0 %v481
    %729 = vmatpush.msra.mxu0 %v476
    %730 = vmatpush.msra.mxu0 %v471
    %731 = vmatpush.msra.mxu0 %v466
    %732 = vmatpush.msra.mxu0 %v461
    %733 = vmatpush.msra.mxu0 %v456
    %734 = vmatpush.msra.mxu0 %v451
    %735 = vmatpush.msra.mxu0 %v446
    %736 = vmatpush.msra.mxu0 %v441
    %737 = vmatpush.msra.mxu0 %v436
    %738 = vmatpush.msra.mxu0 %v431
    %739 = vmatpush.msra.mxu0 %v426
    %740 = vmatmul.f32.gmra.mxu0 %v99
    %v741 = vpop.f32.mrf.mxu0
    %v742 = vadd.f32 %v719, %v741
    %743 = vmatmul.f32.gmra.mxu0 %v104
    %v744 = vpop.f32.mrf.mxu0
    %v745 = vadd.f32 %v722, %v744
    %746 = vdwg.mxu0
    %747 = vmatpush.msra.mxu0 %v182
    %748 = vmatpush.msra.mxu0 %v177
    %749 = vmatpush.msra.mxu0 %v172
    %750 = vmatpush.msra.mxu0 %v167
    %751 = vmatpush.msra.mxu0 %v162
    %752 = vmatpush.msra.mxu0 %v157
    %753 = vmatpush.msra.mxu0 %v152
    %754 = vmatpush.msra.mxu0 %v147
    %755 = vmatpush.msra.mxu0 %v142
    %756 = vmatpush.msra.mxu0 %v137
    %757 = vmatpush.msra.mxu0 %v132
    %758 = vmatpush.msra.mxu0 %v127
    %759 = vmatpush.msra.mxu0 %v122
    %760 = vmatpush.msra.mxu0 %v117
    %761 = vmatpush.msra.mxu0 %v112
    %762 = vmatpush.msra.mxu0 %v107
    %763 = vmatmul.f32.gmra.mxu0 %v95
    %v764 = vpop.f32.mrf.mxu0
    %v765 = vadd.f32 %v509, %v764
    %766 = vmatmul.f32.gmra.mxu0 %v100
    %v767 = vpop.f32.mrf.mxu0
    %v768 = vadd.f32 %v509, %v767
    %769 = vdwg.mxu0
    %770 = vmatpush.msra.mxu0 %v262
    %771 = vmatpush.msra.mxu0 %v257
    %772 = vmatpush.msra.mxu0 %v252
    %773 = vmatpush.msra.mxu0 %v247
    %774 = vmatpush.msra.mxu0 %v242
    %775 = vmatpush.msra.mxu0 %v237
    %776 = vmatpush.msra.mxu0 %v232
    %777 = vmatpush.msra.mxu0 %v227
    %778 = vmatpush.msra.mxu0 %v222
    %779 = vmatpush.msra.mxu0 %v217
    %780 = vmatpush.msra.mxu0 %v212
    %781 = vmatpush.msra.mxu0 %v207
    %782 = vmatpush.msra.mxu0 %v202
    %783 = vmatpush.msra.mxu0 %v197
    %784 = vmatpush.msra.mxu0 %v192
    %785 = vmatpush.msra.mxu0 %v187
    %786 = vmatmul.f32.gmra.mxu0 %v96
    %v787 = vpop.f32.mrf.mxu0
    %v788 = vadd.f32 %v765, %v787
    %789 = vmatmul.f32.gmra.mxu0 %v101
    %v790 = vpop.f32.mrf.mxu0
    %v791 = vadd.f32 %v768, %v790
    %792 = vdwg.mxu0
    %793 = vmatpush.msra.mxu0 %v342
    %794 = vmatpush.msra.mxu0 %v337
    %795 = vmatpush.msra.mxu0 %v332
    %796 = vmatpush.msra.mxu0 %v327
    %797 = vmatpush.msra.mxu0 %v322
    %798 = vmatpush.msra.mxu0 %v317
    %799 = vmatpush.msra.mxu0 %v312
    %800 = vmatpush.msra.mxu0 %v307
    %801 = vmatpush.msra.mxu0 %v302
    %802 = vmatpush.msra.mxu0 %v297
    %803 = vmatpush.msra.mxu0 %v292
    %804 = vmatpush.msra.mxu0 %v287
    %805 = vmatpush.msra.mxu0 %v282
    %806 = vmatpush.msra.mxu0 %v277
    %807 = vmatpush.msra.mxu0 %v272
    %808 = vmatpush.msra.mxu0 %v267
    %809 = vmatmul.f32.gmra.mxu0 %v97
    %v810 = vpop.f32.mrf.mxu0
    %v811 = vadd.f32 %v788, %v810
    %812 = vmatmul.f32.gmra.mxu0 %v102
    %v813 = vpop.f32.mrf.mxu0
    %v814 = vadd.f32 %v791, %v813
    %815 = vdwg.mxu0
    %816 = vmatpush.msra.mxu0 %v422
    %817 = vmatpush.msra.mxu0 %v417
    %818 = vmatpush.msra.mxu0 %v412
    %819 = vmatpush.msra.mxu0 %v407
    %820 = vmatpush.msra.mxu0 %v402
    %821 = vmatpush.msra.mxu0 %v397
    %822 = vmatpush.msra.mxu0 %v392
    %823 = vmatpush.msra.mxu0 %v387
    %824 = vmatpush.msra.mxu0 %v382
    %825 = vmatpush.msra.mxu0 %v377
    %826 = vmatpush.msra.mxu0 %v372
    %827 = vmatpush.msra.mxu0 %v367
    %828 = vmatpush.msra.mxu0 %v362
    %829 = vmatpush.msra.mxu0 %v357
    %830 = vmatpush.msra.mxu0 %v352
    %831 = vmatpush.msra.mxu0 %v347
    %832 = vmatmul.f32.gmra.mxu0 %v98
    %v833 = vpop.f32.mrf.mxu0
    %v834 = vadd.f32 %v811, %v833
    %835 = vmatmul.f32.gmra.mxu0 %v103
    %v836 = vpop.f32.mrf.mxu0
    %v837 = vadd.f32 %v814, %v836
    %838 = vdwg.mxu0
    %839 = vmatpush.msra.mxu0 %v502
    %840 = vmatpush.msra.mxu0 %v497
    %841 = vmatpush.msra.mxu0 %v492
    %842 = vmatpush.msra.mxu0 %v487
    %843 = vmatpush.msra.mxu0 %v482
    %844 = vmatpush.msra.mxu0 %v477
    %845 = vmatpush.msra.mxu0 %v472
    %846 = vmatpush.msra.mxu0 %v467
    %847 = vmatpush.msra.mxu0 %v462
    %848 = vmatpush.msra.mxu0 %v457
    %849 = vmatpush.msra.mxu0 %v452
    %850 = vmatpush.msra.mxu0 %v447
    %851 = vmatpush.msra.mxu0 %v442
    %852 = vmatpush.msra.mxu0 %v437
    %853 = vmatpush.msra.mxu0 %v432
    %854 = vmatpush.msra.mxu0 %v427
    %855 = vmatmul.f32.gmra.mxu0 %v99
    %v856 = vpop.f32.mrf.mxu0
    %v857 = vadd.f32 %v834, %v856
    %858 = vmatmul.f32.gmra.mxu0 %v104
    %v859 = vpop.f32.mrf.mxu0
    %v860 = vadd.f32 %v837, %v859
    %861 = vdwg.mxu0
    %862 = vmatpush.msra.mxu0 %v183
    %863 = vmatpush.msra.mxu0 %v178
    %864 = vmatpush.msra.mxu0 %v173
    %865 = vmatpush.msra.mxu0 %v168
    %866 = vmatpush.msra.mxu0 %v163
    %867 = vmatpush.msra.mxu0 %v158
    %868 = vmatpush.msra.mxu0 %v153
    %869 = vmatpush.msra.mxu0 %v148
    %870 = vmatpush.msra.mxu0 %v143
    %871 = vmatpush.msra.mxu0 %v138
    %872 = vmatpush.msra.mxu0 %v133
    %873 = vmatpush.msra.mxu0 %v128
    %874 = vmatpush.msra.mxu0 %v123
    %875 = vmatpush.msra.mxu0 %v118
    %876 = vmatpush.msra.mxu0 %v113
    %877 = vmatpush.msra.mxu0 %v108
    %878 = vmatmul.f32.gmra.mxu0 %v95
    %v879 = vpop.f32.mrf.mxu0
    %v880 = vadd.f32 %v510, %v879
    %881 = vmatmul.f32.gmra.mxu0 %v100
    %v882 = vpop.f32.mrf.mxu0
    %v883 = vadd.f32 %v510, %v882
    %884 = vdwg.mxu0
    %885 = vmatpush.msra.mxu0 %v263
    %886 = vmatpush.msra.mxu0 %v258
    %887 = vmatpush.msra.mxu0 %v253
    %888 = vmatpush.msra.mxu0 %v248
    %889 = vmatpush.msra.mxu0 %v243
    %890 = vmatpush.msra.mxu0 %v238
    %891 = vmatpush.msra.mxu0 %v233
    %892 = vmatpush.msra.mxu0 %v228
    %893 = vmatpush.msra.mxu0 %v223
    %894 = vmatpush.msra.mxu0 %v218
    %895 = vmatpush.msra.mxu0 %v213
    %896 = vmatpush.msra.mxu0 %v208
    %897 = vmatpush.msra.mxu0 %v203
    %898 = vmatpush.msra.mxu0 %v198
    %899 = vmatpush.msra.mxu0 %v193
    %900 = vmatpush.msra.mxu0 %v188
    %901 = vmatmul.f32.gmra.mxu0 %v96
    %v902 = vpop.f32.mrf.mxu0
    %v903 = vadd.f32 %v880, %v902
    %904 = vmatmul.f32.gmra.mxu0 %v101
    %v905 = vpop.f32.mrf.mxu0
    %v906 = vadd.f32 %v883, %v905
    %907 = vdwg.mxu0
    %908 = vmatpush.msra.mxu0 %v343
    %909 = vmatpush.msra.mxu0 %v338
    %910 = vmatpush.msra.mxu0 %v333
    %911 = vmatpush.msra.mxu0 %v328
    %912 = vmatpush.msra.mxu0 %v323
    %913 = vmatpush.msra.mxu0 %v318
    %914 = vmatpush.msra.mxu0 %v313
    %915 = vmatpush.msra.mxu0 %v308
    %916 = vmatpush.msra.mxu0 %v303
    %917 = vmatpush.msra.mxu0 %v298
    %918 = vmatpush.msra.mxu0 %v293
    %919 = vmatpush.msra.mxu0 %v288
    %920 = vmatpush.msra.mxu0 %v283
    %921 = vmatpush.msra.mxu0 %v278
    %922 = vmatpush.msra.mxu0 %v273
    %923 = vmatpush.msra.mxu0 %v268
    %924 = vmatmul.f32.gmra.mxu0 %v97
    %v925 = vpop.f32.mrf.mxu0
    %v926 = vadd.f32 %v903, %v925
    %927 = vmatmul.f32.gmra.mxu0 %v102
    %v928 = vpop.f32.mrf.mxu0
    %v929 = vadd.f32 %v906, %v928
    %930 = vdwg.mxu0
    %931 = vmatpush.msra.mxu0 %v423
    %932 = vmatpush.msra.mxu0 %v418
    %933 = vmatpush.msra.mxu0 %v413
    %934 = vmatpush.msra.mxu0 %v408
    %935 = vmatpush.msra.mxu0 %v403
    %936 = vmatpush.msra.mxu0 %v398
    %937 = vmatpush.msra.mxu0 %v393
    %938 = vmatpush.msra.mxu0 %v388
    %939 = vmatpush.msra.mxu0 %v383
    %940 = vmatpush.msra.mxu0 %v378
    %941 = vmatpush.msra.mxu0 %v373
    %942 = vmatpush.msra.mxu0 %v368
    %943 = vmatpush.msra.mxu0 %v363
    %944 = vmatpush.msra.mxu0 %v358
    %945 = vmatpush.msra.mxu0 %v353
    %946 = vmatpush.msra.mxu0 %v348
    %947 = vmatmul.f32.gmra.mxu0 %v98
    %v948 = vpop.f32.mrf.mxu0
    %v949 = vadd.f32 %v926, %v948
    %950 = vmatmul.f32.gmra.mxu0 %v103
    %v951 = vpop.f32.mrf.mxu0
    %v952 = vadd.f32 %v929, %v951
    %953 = vdwg.mxu0
    %954 = vmatpush.msra.mxu0 %v503
    %955 = vmatpush.msra.mxu0 %v498
    %956 = vmatpush.msra.mxu0 %v493
    %957 = vmatpush.msra.mxu0 %v488
    %958 = vmatpush.msra.mxu0 %v483
    %959 = vmatpush.msra.mxu0 %v478
    %960 = vmatpush.msra.mxu0 %v473
    %961 = vmatpush.msra.mxu0 %v468
    %962 = vmatpush.msra.mxu0 %v463
    %963 = vmatpush.msra.mxu0 %v458
    %964 = vmatpush.msra.mxu0 %v453
    %965 = vmatpush.msra.mxu0 %v448
    %966 = vmatpush.msra.mxu0 %v443
    %967 = vmatpush.msra.mxu0 %v438
    %968 = vmatpush.msra.mxu0 %v433
    %969 = vmatpush.msra.mxu0 %v428
    %970 = vmatmul.f32.gmra.mxu0 %v99
    %v971 = vpop.f32.mrf.mxu0
    %v972 = vadd.f32 %v949, %v971
    %973 = vmatmul.f32.gmra.mxu0 %v104
    %v974 = vpop.f32.mrf.mxu0
    %v975 = vadd.f32 %v952, %v974
    %976 = vdwg.mxu0
    %977 = vmatpush.msra.mxu0 %v184
    %978 = vmatpush.msra.mxu0 %v179
    %979 = vmatpush.msra.mxu0 %v174
    %980 = vmatpush.msra.mxu0 %v169
    %981 = vmatpush.msra.mxu0 %v164
    %982 = vmatpush.msra.mxu0 %v159
    %983 = vmatpush.msra.mxu0 %v154
    %984 = vmatpush.msra.mxu0 %v149
    %985 = vmatpush.msra.mxu0 %v144
    %986 = vmatpush.msra.mxu0 %v139
    %987 = vmatpush.msra.mxu0 %v134
    %988 = vmatpush.msra.mxu0 %v129
    %989 = vmatpush.msra.mxu0 %v124
    %990 = vmatpush.msra.mxu0 %v119
    %991 = vmatpush.msra.mxu0 %v114
    %992 = vmatpush.msra.mxu0 %v109
    %993 = vmatmul.f32.gmra.mxu0 %v95
    %v994 = vpop.f32.mrf.mxu0
    %v995 = vadd.f32 %v511, %v994
    %996 = vmatmul.f32.gmra.mxu0 %v100
    %v997 = vpop.f32.mrf.mxu0
    %v998 = vadd.f32 %v511, %v997
    %999 = vdwg.mxu0
    %1000 = vmatpush.msra.mxu0 %v264
    %1001 = vmatpush.msra.mxu0 %v259
    %1002 = vmatpush.msra.mxu0 %v254
    %1003 = vmatpush.msra.mxu0 %v249
    %1004 = vmatpush.msra.mxu0 %v244
    %1005 = vmatpush.msra.mxu0 %v239
    %1006 = vmatpush.msra.mxu0 %v234
    %1007 = vmatpush.msra.mxu0 %v229
    %1008 = vmatpush.msra.mxu0 %v224
    %1009 = vmatpush.msra.mxu0 %v219
    %1010 = vmatpush.msra.mxu0 %v214
    %1011 = vmatpush.msra.mxu0 %v209
    %1012 = vmatpush.msra.mxu0 %v204
    %1013 = vmatpush.msra.mxu0 %v199
    %1014 = vmatpush.msra.mxu0 %v194
    %1015 = vmatpush.msra.mxu0 %v189
    %1016 = vmatmul.f32.gmra.mxu0 %v96
    %v1017 = vpop.f32.mrf.mxu0
    %v1018 = vadd.f32 %v995, %v1017
    %1019 = vmatmul.f32.gmra.mxu0 %v101
    %v1020 = vpop.f32.mrf.mxu0
    %v1021 = vadd.f32 %v998, %v1020
    %1022 = vdwg.mxu0
    %1023 = vmatpush.msra.mxu0 %v344
    %1024 = vmatpush.msra.mxu0 %v339
    %1025 = vmatpush.msra.mxu0 %v334
    %1026 = vmatpush.msra.mxu0 %v329
    %1027 = vmatpush.msra.mxu0 %v324
    %1028 = vmatpush.msra.mxu0 %v319
    %1029 = vmatpush.msra.mxu0 %v314
    %1030 = vmatpush.msra.mxu0 %v309
    %1031 = vmatpush.msra.mxu0 %v304
    %1032 = vmatpush.msra.mxu0 %v299
    %1033 = vmatpush.msra.mxu0 %v294
    %1034 = vmatpush.msra.mxu0 %v289
    %1035 = vmatpush.msra.mxu0 %v284
    %1036 = vmatpush.msra.mxu0 %v279
    %1037 = vmatpush.msra.mxu0 %v274
    %1038 = vmatpush.msra.mxu0 %v269
    %1039 = vmatmul.f32.gmra.mxu0 %v97
    %v1040 = vpop.f32.mrf.mxu0
    %v1041 = vadd.f32 %v1018, %v1040
    %1042 = vmatmul.f32.gmra.mxu0 %v102
    %v1043 = vpop.f32.mrf.mxu0
    %v1044 = vadd.f32 %v1021, %v1043
    %1045 = vdwg.mxu0
    %1046 = vmatpush.msra.mxu0 %v424
    %1047 = vmatpush.msra.mxu0 %v419
    %1048 = vmatpush.msra.mxu0 %v414
    %1049 = vmatpush.msra.mxu0 %v409
    %1050 = vmatpush.msra.mxu0 %v404
    %1051 = vmatpush.msra.mxu0 %v399
    %1052 = vmatpush.msra.mxu0 %v394
    %1053 = vmatpush.msra.mxu0 %v389
    %1054 = vmatpush.msra.mxu0 %v384
    %1055 = vmatpush.msra.mxu0 %v379
    %1056 = vmatpush.msra.mxu0 %v374
    %1057 = vmatpush.msra.mxu0 %v369
    %1058 = vmatpush.msra.mxu0 %v364
    %1059 = vmatpush.msra.mxu0 %v359
    %1060 = vmatpush.msra.mxu0 %v354
    %1061 = vmatpush.msra.mxu0 %v349
    %1062 = vmatmul.f32.gmra.mxu0 %v98
    %v1063 = vpop.f32.mrf.mxu0
    %v1064 = vadd.f32 %v1041, %v1063
    %1065 = vmatmul.f32.gmra.mxu0 %v103
    %v1066 = vpop.f32.mrf.mxu0
    %v1067 = vadd.f32 %v1044, %v1066
    %1068 = vdwg.mxu0
    %1069 = vmatpush.msra.mxu0 %v504
    %1070 = vmatpush.msra.mxu0 %v499
    %1071 = vmatpush.msra.mxu0 %v494
    %1072 = vmatpush.msra.mxu0 %v489
    %1073 = vmatpush.msra.mxu0 %v484
    %1074 = vmatpush.msra.mxu0 %v479
    %1075 = vmatpush.msra.mxu0 %v474
    %1076 = vmatpush.msra.mxu0 %v469
    %1077 = vmatpush.msra.mxu0 %v464
    %1078 = vmatpush.msra.mxu0 %v459
    %1079 = vmatpush.msra.mxu0 %v454
    %1080 = vmatpush.msra.mxu0 %v449
    %1081 = vmatpush.msra.mxu0 %v444
    %1082 = vmatpush.msra.mxu0 %v439
    %1083 = vmatpush.msra.mxu0 %v434
    %1084 = vmatpush.msra.mxu0 %v429
    %1085 = vmatmul.f32.gmra.mxu0 %v99
    %v1086 = vpop.f32.mrf.mxu0
    %v1087 = vadd.f32 %v1064, %v1086
    %1088 = vmatmul.f32.gmra.mxu0 %v104
    %v1089 = vpop.f32.mrf.mxu0
    %v1090 = vadd.f32 %v1067, %v1089
    %1091 = vdwg.mxu0
    %v1092 = vmul.f32 %v627, 0.2
    %v1093 = vmul.f32 %v742, 0.2
    %v1094 = vmul.f32 %v857, 0.2
    %v1095 = vmul.f32 %v972, 0.2
    %v1096 = vmul.f32 %v1087, 0.2
    %v1097 = vmul.f32 %v630, 0.2
    %v1098 = vmul.f32 %v745, 0.2
    %v1099 = vmul.f32 %v860, 0.2
    %v1100 = vmul.f32 %v975, 0.2
    %v1101 = vmul.f32 %v1090, 0.2
    %v1102 = vmax.f32 %v627, %v1092
    %v1103 = vmax.f32 %v742, %v1093
    %v1104 = vmax.f32 %v857, %v1094
    %v1105 = vmax.f32 %v972, %v1095
    %v1106 = vmax.f32 %v1087, %v1096
    %v1107 = vmax.f32 %v630, %v1097
    %v1108 = vmax.f32 %v745, %v1098
    %v1109 = vmax.f32 %v860, %v1099
    %v1110 = vmax.f32 %v975, %v1100
    %v1111 = vmax.f32 %v1090, %v1101
    %v1112 = vld [vmem:[#allocation8] sm:$0xff]
    %v1113 = vld [vmem:[#allocation8 + $0x8] sm:$0xff]
    %v1114 = vld [vmem:[#allocation8 + $0x10] sm:$0xff]
    %v1115 = vld [vmem:[#allocation8 + $0x18] sm:$0xff]
    %v1116 = vld [vmem:[#allocation8 + $0x20] sm:$0xff]
    %v1117 = vld [vmem:[#allocation8 + $0x28] sm:$0xff]
    %v1118 = vld [vmem:[#allocation8 + $0x30] sm:$0xff]
    %v1119 = vld [vmem:[#allocation8 + $0x38] sm:$0xff]
    %v1120 = vld [vmem:[#allocation8 + $0x40] sm:$0xff]
    %v1121 = vld [vmem:[#allocation8 + $0x48] sm:$0xff]
    %v1122 = vld [vmem:[#allocation8 + $0x50] sm:$0xff]
    %v1123 = vld [vmem:[#allocation8 + $0x58] sm:$0xff]
    %v1124 = vld [vmem:[#allocation8 + $0x60] sm:$0xff]
    %v1125 = vld [vmem:[#allocation8 + $0x68] sm:$0xff]
    %v1126 = vld [vmem:[#allocation8 + $0x70] sm:$0xff]
    %v1127 = vld [vmem:[#allocation8 + $0x78] sm:$0xff]
    %v1128 = vld [vmem:[#allocation8 + $0x80] sm:$0xff]
    %v1129 = vld [vmem:[#allocation8 + $0x88] sm:$0xff]
    %v1130 = vld [vmem:[#allocation8 + $0x90] sm:$0xff]
    %v1131 = vld [vmem:[#allocation8 + $0x98] sm:$0xff]
    %v1132 = vld [vmem:[#allocation8 + $0xa0] sm:$0xff]
    %v1133 = vld [vmem:[#allocation8 + $0xa8] sm:$0xff]
    %v1134 = vld [vmem:[#allocation8 + $0xb0] sm:$0xff]
    %v1135 = vld [vmem:[#allocation8 + $0xb8] sm:$0xff]
    %v1136 = vld [vmem:[#allocation8 + $0xc0] sm:$0xff]
    %v1137 = vld [vmem:[#allocation8 + $0xc8] sm:$0xff]
    %v1138 = vld [vmem:[#allocation8 + $0xd0] sm:$0xff]
    %v1139 = vld [vmem:[#allocation8 + $0xd8] sm:$0xff]
    %v1140 = vld [vmem:[#allocation8 + $0xe0] sm:$0xff]
    %v1141 = vld [vmem:[#allocation8 + $0xe8] sm:$0xff]
    %v1142 = vld [vmem:[#allocation8 + $0xf0] sm:$0xff]
    %v1143 = vld [vmem:[#allocation8 + $0xf8] sm:$0xff]
    %v1144 = vld [vmem:[#allocation8 + $0x100] sm:$0xff]
    %v1145 = vld [vmem:[#allocation8 + $0x108] sm:$0xff]
    %v1146 = vld [vmem:[#allocation8 + $0x110] sm:$0xff]
    %v1147 = vld [vmem:[#allocation8 + $0x118] sm:$0xff]
    %v1148 = vld [vmem:[#allocation8 + $0x120] sm:$0xff]
    %v1149 = vld [vmem:[#allocation8 + $0x128] sm:$0xff]
    %v1150 = vld [vmem:[#allocation8 + $0x130] sm:$0xff]
    %v1151 = vld [vmem:[#allocation8 + $0x138] sm:$0xff]
    %v1152 = vld [vmem:[#allocation8 + $0x140] sm:$0xff]
    %v1153 = vld [vmem:[#allocation8 + $0x148] sm:$0xff]
    %v1154 = vld [vmem:[#allocation8 + $0x150] sm:$0xff]
    %v1155 = vld [vmem:[#allocation8 + $0x158] sm:$0xff]
    %v1156 = vld [vmem:[#allocation8 + $0x160] sm:$0xff]
    %v1157 = vld [vmem:[#allocation8 + $0x168] sm:$0xff]
    %v1158 = vld [vmem:[#allocation8 + $0x170] sm:$0xff]
    %v1159 = vld [vmem:[#allocation8 + $0x178] sm:$0xff]
    %v1160 = vld [vmem:[#allocation8 + $0x180] sm:$0xff]
    %v1161 = vld [vmem:[#allocation8 + $0x188] sm:$0xff]
    %v1162 = vld [vmem:[#allocation8 + $0x190] sm:$0xff]
    %v1163 = vld [vmem:[#allocation8 + $0x198] sm:$0xff]
    %v1164 = vld [vmem:[#allocation8 + $0x1a0] sm:$0xff]
    %v1165 = vld [vmem:[#allocation8 + $0x1a8] sm:$0xff]
    %v1166 = vld [vmem:[#allocation8 + $0x1b0] sm:$0xff]
    %v1167 = vld [vmem:[#allocation8 + $0x1b8] sm:$0xff]
    %v1168 = vld [vmem:[#allocation8 + $0x1c0] sm:$0xff]
    %v1169 = vld [vmem:[#allocation8 + $0x1c8] sm:$0xff]
    %v1170 = vld [vmem:[#allocation8 + $0x1d0] sm:$0xff]
    %v1171 = vld [vmem:[#allocation8 + $0x1d8] sm:$0xff]
    %v1172 = vld [vmem:[#allocation8 + $0x1e0] sm:$0xff]
    %v1173 = vld [vmem:[#allocation8 + $0x1e8] sm:$0xff]
    %v1174 = vld [vmem:[#allocation8 + $0x1f0] sm:$0xff]
    %v1175 = vld [vmem:[#allocation8 + $0x1f8] sm:$0xff]
    %v1176 = vld [vmem:[#allocation8 + $0x200] sm:$0xff]
    %v1177 = vld [vmem:[#allocation8 + $0x208] sm:$0xff]
    %v1178 = vld [vmem:[#allocation8 + $0x210] sm:$0xff]
    %v1179 = vld [vmem:[#allocation8 + $0x218] sm:$0xff]
    %v1180 = vld [vmem:[#allocation8 + $0x220] sm:$0xff]
    %v1181 = vld [vmem:[#allocation8 + $0x228] sm:$0xff]
    %v1182 = vld [vmem:[#allocation8 + $0x230] sm:$0xff]
    %v1183 = vld [vmem:[#allocation8 + $0x238] sm:$0xff]
    %v1184 = vld [vmem:[#allocation8 + $0x240] sm:$0xff]
    %v1185 = vld [vmem:[#allocation8 + $0x248] sm:$0xff]
    %v1186 = vld [vmem:[#allocation8 + $0x250] sm:$0xff]
    %v1187 = vld [vmem:[#allocation8 + $0x258] sm:$0xff]
    %v1188 = vld [vmem:[#allocation8 + $0x260] sm:$0xff]
    %v1189 = vld [vmem:[#allocation8 + $0x268] sm:$0xff]
    %v1190 = vld [vmem:[#allocation8 + $0x270] sm:$0xff]
    %v1191 = vld [vmem:[#allocation8 + $0x278] sm:$0xff]
    %v1192 = vld [vmem:[#allocation8 + $0x280] sm:$0xff]
    %v1193 = vld [vmem:[#allocation8 + $0x288] sm:$0xff]
    %v1194 = vld [vmem:[#allocation8 + $0x290] sm:$0xff]
    %v1195 = vld [vmem:[#allocation8 + $0x298] sm:$0xff]
    %v1196 = vld [vmem:[#allocation8 + $0x2a0] sm:$0xff]
    %v1197 = vld [vmem:[#allocation8 + $0x2a8] sm:$0xff]
    %v1198 = vld [vmem:[#allocation8 + $0x2b0] sm:$0xff]
    %v1199 = vld [vmem:[#allocation8 + $0x2b8] sm:$0xff]
    %v1200 = vld [vmem:[#allocation8 + $0x2c0] sm:$0xff]
    %v1201 = vld [vmem:[#allocation8 + $0x2c8] sm:$0xff]
    %v1202 = vld [vmem:[#allocation8 + $0x2d0] sm:$0xff]
    %v1203 = vld [vmem:[#allocation8 + $0x2d8] sm:$0xff]
    %v1204 = vld [vmem:[#allocation8 + $0x2e0] sm:$0xff]
    %v1205 = vld [vmem:[#allocation8 + $0x2e8] sm:$0xff]
    %v1206 = vld [vmem:[#allocation8 + $0x2f0] sm:$0xff]
    %v1207 = vld [vmem:[#allocation8 + $0x2f8] sm:$0xff]
    %v1208 = vld [vmem:[#allocation8 + $0x300] sm:$0xff]
    %v1209 = vld [vmem:[#allocation8 + $0x308] sm:$0xff]
    %v1210 = vld [vmem:[#allocation8 + $0x310] sm:$0xff]
    %v1211 = vld [vmem:[#allocation8 + $0x318] sm:$0xff]
    %v1212 = vld [vmem:[#allocation8 + $0x320] sm:$0xff]
    %v1213 = vld [vmem:[#allocation8 + $0x328] sm:$0xff]
    %v1214 = vld [vmem:[#allocation8 + $0x330] sm:$0xff]
    %v1215 = vld [vmem:[#allocation8 + $0x338] sm:$0xff]
    %v1216 = vld [vmem:[#allocation8 + $0x340] sm:$0xff]
    %v1217 = vld [vmem:[#allocation8 + $0x348] sm:$0xff]
    %v1218 = vld [vmem:[#allocation8 + $0x350] sm:$0xff]
    %v1219 = vld [vmem:[#allocation8 + $0x358] sm:$0xff]
    %v1220 = vld [vmem:[#allocation8 + $0x360] sm:$0xff]
    %v1221 = vld [vmem:[#allocation8 + $0x368] sm:$0xff]
    %v1222 = vld [vmem:[#allocation8 + $0x370] sm:$0xff]
    %v1223 = vld [vmem:[#allocation8 + $0x378] sm:$0xff]
    %v1224 = vld [vmem:[#allocation8 + $0x380] sm:$0xff]
    %v1225 = vld [vmem:[#allocation8 + $0x388] sm:$0xff]
    %v1226 = vld [vmem:[#allocation8 + $0x390] sm:$0xff]
    %v1227 = vld [vmem:[#allocation8 + $0x398] sm:$0xff]
    %v1228 = vld [vmem:[#allocation8 + $0x3a0] sm:$0xff]
    %v1229 = vld [vmem:[#allocation8 + $0x3a8] sm:$0xff]
    %v1230 = vld [vmem:[#allocation8 + $0x3b0] sm:$0xff]
    %v1231 = vld [vmem:[#allocation8 + $0x3b8] sm:$0xff]
    %v1232 = vld [vmem:[#allocation8 + $0x3c0] sm:$0xff]
    %v1233 = vld [vmem:[#allocation8 + $0x3c8] sm:$0xff]
    %v1234 = vld [vmem:[#allocation8 + $0x3d0] sm:$0xff]
    %v1235 = vld [vmem:[#allocation8 + $0x3d8] sm:$0xff]
    %v1236 = vld [vmem:[#allocation8 + $0x3e0] sm:$0xff]
    %v1237 = vld [vmem:[#allocation8 + $0x3e8] sm:$0xff]
    %v1238 = vld [vmem:[#allocation8 + $0x3f0] sm:$0xff]
    %v1239 = vld [vmem:[#allocation8 + $0x3f8] sm:$0xff]
    %v1240 = vld [vmem:[#allocation8 + $0x400] sm:$0xff]
    %v1241 = vld [vmem:[#allocation8 + $0x408] sm:$0xff]
    %v1242 = vld [vmem:[#allocation8 + $0x410] sm:$0xff]
    %v1243 = vld [vmem:[#allocation8 + $0x418] sm:$0xff]
    %v1244 = vld [vmem:[#allocation8 + $0x420] sm:$0xff]
    %v1245 = vld [vmem:[#allocation8 + $0x428] sm:$0xff]
    %v1246 = vld [vmem:[#allocation8 + $0x430] sm:$0xff]
    %v1247 = vld [vmem:[#allocation8 + $0x438] sm:$0xff]
    %v1248 = vld [vmem:[#allocation8 + $0x440] sm:$0xff]
    %v1249 = vld [vmem:[#allocation8 + $0x448] sm:$0xff]
    %v1250 = vld [vmem:[#allocation8 + $0x450] sm:$0xff]
    %v1251 = vld [vmem:[#allocation8 + $0x458] sm:$0xff]
    %v1252 = vld [vmem:[#allocation8 + $0x460] sm:$0xff]
    %v1253 = vld [vmem:[#allocation8 + $0x468] sm:$0xff]
    %v1254 = vld [vmem:[#allocation8 + $0x470] sm:$0xff]
    %v1255 = vld [vmem:[#allocation8 + $0x478] sm:$0xff]
    %v1256 = vld [vmem:[#allocation8 + $0x480] sm:$0xff]
    %v1257 = vld [vmem:[#allocation8 + $0x488] sm:$0xff]
    %v1258 = vld [vmem:[#allocation8 + $0x490] sm:$0xff]
    %v1259 = vld [vmem:[#allocation8 + $0x498] sm:$0xff]
    %v1260 = vld [vmem:[#allocation8 + $0x4a0] sm:$0xff]
    %v1261 = vld [vmem:[#allocation8 + $0x4a8] sm:$0xff]
    %v1262 = vld [vmem:[#allocation8 + $0x4b0] sm:$0xff]
    %v1263 = vld [vmem:[#allocation8 + $0x4b8] sm:$0xff]
    %v1264 = vld [vmem:[#allocation8 + $0x4c0] sm:$0xff]
    %v1265 = vld [vmem:[#allocation8 + $0x4c8] sm:$0xff]
    %v1266 = vld [vmem:[#allocation8 + $0x4d0] sm:$0xff]
    %v1267 = vld [vmem:[#allocation8 + $0x4d8] sm:$0xff]
    %v1268 = vld [vmem:[#allocation8 + $0x4e0] sm:$0xff]
    %v1269 = vld [vmem:[#allocation8 + $0x4e8] sm:$0xff]
    %v1270 = vld [vmem:[#allocation8 + $0x4f0] sm:$0xff]
    %v1271 = vld [vmem:[#allocation8 + $0x4f8] sm:$0xff]
    %v1272 = vld [vmem:[#allocation8 + $0x500] sm:$0xff]
    %v1273 = vld [vmem:[#allocation8 + $0x508] sm:$0xff]
    %v1274 = vld [vmem:[#allocation8 + $0x510] sm:$0xff]
    %v1275 = vld [vmem:[#allocation8 + $0x518] sm:$0xff]
    %v1276 = vld [vmem:[#allocation8 + $0x520] sm:$0xff]
    %v1277 = vld [vmem:[#allocation8 + $0x528] sm:$0xff]
    %v1278 = vld [vmem:[#allocation8 + $0x530] sm:$0xff]
    %v1279 = vld [vmem:[#allocation8 + $0x538] sm:$0xff]
    %v1280 = vld [vmem:[#allocation8 + $0x540] sm:$0xff]
    %v1281 = vld [vmem:[#allocation8 + $0x548] sm:$0xff]
    %v1282 = vld [vmem:[#allocation8 + $0x550] sm:$0xff]
    %v1283 = vld [vmem:[#allocation8 + $0x558] sm:$0xff]
    %v1284 = vld [vmem:[#allocation8 + $0x560] sm:$0xff]
    %v1285 = vld [vmem:[#allocation8 + $0x568] sm:$0xff]
    %v1286 = vld [vmem:[#allocation8 + $0x570] sm:$0xff]
    %v1287 = vld [vmem:[#allocation8 + $0x578] sm:$0xff]
    %v1288 = vld [vmem:[#allocation8 + $0x580] sm:$0xff]
    %v1289 = vld [vmem:[#allocation8 + $0x588] sm:$0xff]
    %v1290 = vld [vmem:[#allocation8 + $0x590] sm:$0xff]
    %v1291 = vld [vmem:[#allocation8 + $0x598] sm:$0xff]
    %v1292 = vld [vmem:[#allocation8 + $0x5a0] sm:$0xff]
    %v1293 = vld [vmem:[#allocation8 + $0x5a8] sm:$0xff]
    %v1294 = vld [vmem:[#allocation8 + $0x5b0] sm:$0xff]
    %v1295 = vld [vmem:[#allocation8 + $0x5b8] sm:$0xff]
    %v1296 = vld [vmem:[#allocation8 + $0x5c0] sm:$0xff]
    %v1297 = vld [vmem:[#allocation8 + $0x5c8] sm:$0xff]
    %v1298 = vld [vmem:[#allocation8 + $0x5d0] sm:$0xff]
    %v1299 = vld [vmem:[#allocation8 + $0x5d8] sm:$0xff]
    %v1300 = vld [vmem:[#allocation8 + $0x5e0] sm:$0xff]
    %v1301 = vld [vmem:[#allocation8 + $0x5e8] sm:$0xff]
    %v1302 = vld [vmem:[#allocation8 + $0x5f0] sm:$0xff]
    %v1303 = vld [vmem:[#allocation8 + $0x5f8] sm:$0xff]
    %v1304 = vld [vmem:[#allocation8 + $0x600] sm:$0xff]
    %v1305 = vld [vmem:[#allocation8 + $0x608] sm:$0xff]
    %v1306 = vld [vmem:[#allocation8 + $0x610] sm:$0xff]
    %v1307 = vld [vmem:[#allocation8 + $0x618] sm:$0xff]
    %v1308 = vld [vmem:[#allocation8 + $0x620] sm:$0xff]
    %v1309 = vld [vmem:[#allocation8 + $0x628] sm:$0xff]
    %v1310 = vld [vmem:[#allocation8 + $0x630] sm:$0xff]
    %v1311 = vld [vmem:[#allocation8 + $0x638] sm:$0xff]
    %v1312 = vld [vmem:[#allocation8 + $0x640] sm:$0xff]
    %v1313 = vld [vmem:[#allocation8 + $0x648] sm:$0xff]
    %v1314 = vld [vmem:[#allocation8 + $0x650] sm:$0xff]
    %v1315 = vld [vmem:[#allocation8 + $0x658] sm:$0xff]
    %v1316 = vld [vmem:[#allocation8 + $0x660] sm:$0xff]
    %v1317 = vld [vmem:[#allocation8 + $0x668] sm:$0xff]
    %v1318 = vld [vmem:[#allocation8 + $0x670] sm:$0xff]
    %v1319 = vld [vmem:[#allocation8 + $0x678] sm:$0xff]
    %v1320 = vld [vmem:[#allocation8 + $0x680] sm:$0xff]
    %v1321 = vld [vmem:[#allocation8 + $0x688] sm:$0xff]
    %v1322 = vld [vmem:[#allocation8 + $0x690] sm:$0xff]
    %v1323 = vld [vmem:[#allocation8 + $0x698] sm:$0xff]
    %v1324 = vld [vmem:[#allocation8 + $0x6a0] sm:$0xff]
    %v1325 = vld [vmem:[#allocation8 + $0x6a8] sm:$0xff]
    %v1326 = vld [vmem:[#allocation8 + $0x6b0] sm:$0xff]
    %v1327 = vld [vmem:[#allocation8 + $0x6b8] sm:$0xff]
    %v1328 = vld [vmem:[#allocation8 + $0x6c0] sm:$0xff]
    %v1329 = vld [vmem:[#allocation8 + $0x6c8] sm:$0xff]
    %v1330 = vld [vmem:[#allocation8 + $0x6d0] sm:$0xff]
    %v1331 = vld [vmem:[#allocation8 + $0x6d8] sm:$0xff]
    %v1332 = vld [vmem:[#allocation8 + $0x6e0] sm:$0xff]
    %v1333 = vld [vmem:[#allocation8 + $0x6e8] sm:$0xff]
    %v1334 = vld [vmem:[#allocation8 + $0x6f0] sm:$0xff]
    %v1335 = vld [vmem:[#allocation8 + $0x6f8] sm:$0xff]
    %v1336 = vld [vmem:[#allocation8 + $0x700] sm:$0xff]
    %v1337 = vld [vmem:[#allocation8 + $0x708] sm:$0xff]
    %v1338 = vld [vmem:[#allocation8 + $0x710] sm:$0xff]
    %v1339 = vld [vmem:[#allocation8 + $0x718] sm:$0xff]
    %v1340 = vld [vmem:[#allocation8 + $0x720] sm:$0xff]
    %v1341 = vld [vmem:[#allocation8 + $0x728] sm:$0xff]
    %v1342 = vld [vmem:[#allocation8 + $0x730] sm:$0xff]
    %v1343 = vld [vmem:[#allocation8 + $0x738] sm:$0xff]
    %v1344 = vld [vmem:[#allocation8 + $0x740] sm:$0xff]
    %v1345 = vld [vmem:[#allocation8 + $0x748] sm:$0xff]
    %v1346 = vld [vmem:[#allocation8 + $0x750] sm:$0xff]
    %v1347 = vld [vmem:[#allocation8 + $0x758] sm:$0xff]
    %v1348 = vld [vmem:[#allocation8 + $0x760] sm:$0xff]
    %v1349 = vld [vmem:[#allocation8 + $0x768] sm:$0xff]
    %v1350 = vld [vmem:[#allocation8 + $0x770] sm:$0xff]
    %v1351 = vld [vmem:[#allocation8 + $0x778] sm:$0xff]
    %v1352 = vld [vmem:[#allocation8 + $0x780] sm:$0xff]
    %v1353 = vld [vmem:[#allocation8 + $0x788] sm:$0xff]
    %v1354 = vld [vmem:[#allocation8 + $0x790] sm:$0xff]
    %v1355 = vld [vmem:[#allocation8 + $0x798] sm:$0xff]
    %v1356 = vld [vmem:[#allocation8 + $0x7a0] sm:$0xff]
    %v1357 = vld [vmem:[#allocation8 + $0x7a8] sm:$0xff]
    %v1358 = vld [vmem:[#allocation8 + $0x7b0] sm:$0xff]
    %v1359 = vld [vmem:[#allocation8 + $0x7b8] sm:$0xff]
    %v1360 = vld [vmem:[#allocation8 + $0x7c0] sm:$0xff]
    %v1361 = vld [vmem:[#allocation8 + $0x7c8] sm:$0xff]
    %v1362 = vld [vmem:[#allocation8 + $0x7d0] sm:$0xff]
    %v1363 = vld [vmem:[#allocation8 + $0x7d8] sm:$0xff]
    %v1364 = vld [vmem:[#allocation8 + $0x7e0] sm:$0xff]
    %v1365 = vld [vmem:[#allocation8 + $0x7e8] sm:$0xff]
    %v1366 = vld [vmem:[#allocation8 + $0x7f0] sm:$0xff]
    %v1367 = vld [vmem:[#allocation8 + $0x7f8] sm:$0xff]
    %v1368 = vld [vmem:[#allocation8 + $0x800] sm:$0xff]
    %v1369 = vld [vmem:[#allocation8 + $0x808] sm:$0xff]
    %v1370 = vld [vmem:[#allocation8 + $0x810] sm:$0xff]
    %v1371 = vld [vmem:[#allocation8 + $0x818] sm:$0xff]
    %v1372 = vld [vmem:[#allocation8 + $0x820] sm:$0xff]
    %v1373 = vld [vmem:[#allocation8 + $0x828] sm:$0xff]
    %v1374 = vld [vmem:[#allocation8 + $0x830] sm:$0xff]
    %v1375 = vld [vmem:[#allocation8 + $0x838] sm:$0xff]
    %v1376 = vld [vmem:[#allocation8 + $0x840] sm:$0xff]
    %v1377 = vld [vmem:[#allocation8 + $0x848] sm:$0xff]
    %v1378 = vld [vmem:[#allocation8 + $0x850] sm:$0xff]
    %v1379 = vld [vmem:[#allocation8 + $0x858] sm:$0xff]
    %v1380 = vld [vmem:[#allocation8 + $0x860] sm:$0xff]
    %v1381 = vld [vmem:[#allocation8 + $0x868] sm:$0xff]
    %v1382 = vld [vmem:[#allocation8 + $0x870] sm:$0xff]
    %v1383 = vld [vmem:[#allocation8 + $0x878] sm:$0xff]
    %v1384 = vld [vmem:[#allocation8 + $0x880] sm:$0xff]
    %v1385 = vld [vmem:[#allocation8 + $0x888] sm:$0xff]
    %v1386 = vld [vmem:[#allocation8 + $0x890] sm:$0xff]
    %v1387 = vld [vmem:[#allocation8 + $0x898] sm:$0xff]
    %v1388 = vld [vmem:[#allocation8 + $0x8a0] sm:$0xff]
    %v1389 = vld [vmem:[#allocation8 + $0x8a8] sm:$0xff]
    %v1390 = vld [vmem:[#allocation8 + $0x8b0] sm:$0xff]
    %v1391 = vld [vmem:[#allocation8 + $0x8b8] sm:$0xff]
    %v1392 = vld [vmem:[#allocation8 + $0x8c0] sm:$0xff]
    %v1393 = vld [vmem:[#allocation8 + $0x8c8] sm:$0xff]
    %v1394 = vld [vmem:[#allocation8 + $0x8d0] sm:$0xff]
    %v1395 = vld [vmem:[#allocation8 + $0x8d8] sm:$0xff]
    %v1396 = vld [vmem:[#allocation8 + $0x8e0] sm:$0xff]
    %v1397 = vld [vmem:[#allocation8 + $0x8e8] sm:$0xff]
    %v1398 = vld [vmem:[#allocation8 + $0x8f0] sm:$0xff]
    %v1399 = vld [vmem:[#allocation8 + $0x8f8] sm:$0xff]
    %v1400 = vld [vmem:[#allocation8 + $0x900] sm:$0xff]
    %v1401 = vld [vmem:[#allocation8 + $0x908] sm:$0xff]
    %v1402 = vld [vmem:[#allocation8 + $0x910] sm:$0xff]
    %v1403 = vld [vmem:[#allocation8 + $0x918] sm:$0xff]
    %v1404 = vld [vmem:[#allocation8 + $0x920] sm:$0xff]
    %v1405 = vld [vmem:[#allocation8 + $0x928] sm:$0xff]
    %v1406 = vld [vmem:[#allocation8 + $0x930] sm:$0xff]
    %v1407 = vld [vmem:[#allocation8 + $0x938] sm:$0xff]
    %v1408 = vld [vmem:[#allocation8 + $0x940] sm:$0xff]
    %v1409 = vld [vmem:[#allocation8 + $0x948] sm:$0xff]
    %v1410 = vld [vmem:[#allocation8 + $0x950] sm:$0xff]
    %v1411 = vld [vmem:[#allocation8 + $0x958] sm:$0xff]
    %v1412 = vld [vmem:[#allocation8 + $0x960] sm:$0xff]
    %v1413 = vld [vmem:[#allocation8 + $0x968] sm:$0xff]
    %v1414 = vld [vmem:[#allocation8 + $0x970] sm:$0xff]
    %v1415 = vld [vmem:[#allocation8 + $0x978] sm:$0xff]
    %v1416 = vld [vmem:[#allocation8 + $0x980] sm:$0xff]
    %v1417 = vld [vmem:[#allocation8 + $0x988] sm:$0xff]
    %v1418 = vld [vmem:[#allocation8 + $0x990] sm:$0xff]
    %v1419 = vld [vmem:[#allocation8 + $0x998] sm:$0xff]
    %v1420 = vld [vmem:[#allocation8 + $0x9a0] sm:$0xff]
    %v1421 = vld [vmem:[#allocation8 + $0x9a8] sm:$0xff]
    %v1422 = vld [vmem:[#allocation8 + $0x9b0] sm:$0xff]
    %v1423 = vld [vmem:[#allocation8 + $0x9b8] sm:$0xff]
    %v1424 = vld [vmem:[#allocation8 + $0x9c0] sm:$0xff]
    %v1425 = vld [vmem:[#allocation8 + $0x9c8] sm:$0xff]
    %v1426 = vld [vmem:[#allocation8 + $0x9d0] sm:$0xff]
    %v1427 = vld [vmem:[#allocation8 + $0x9d8] sm:$0xff]
    %v1428 = vld [vmem:[#allocation8 + $0x9e0] sm:$0xff]
    %v1429 = vld [vmem:[#allocation8 + $0x9e8] sm:$0xff]
    %v1430 = vld [vmem:[#allocation8 + $0x9f0] sm:$0xff]
    %v1431 = vld [vmem:[#allocation8 + $0x9f8] sm:$0xff]
    %v1432 = vld [vmem:[#allocation8 + $0xa00] sm:$0xff]
    %v1433 = vld [vmem:[#allocation8 + $0xa08] sm:$0xff]
    %v1434 = vld [vmem:[#allocation8 + $0xa10] sm:$0xff]
    %v1435 = vld [vmem:[#allocation8 + $0xa18] sm:$0xff]
    %v1436 = vld [vmem:[#allocation8 + $0xa20] sm:$0xff]
    %v1437 = vld [vmem:[#allocation8 + $0xa28] sm:$0xff]
    %v1438 = vld [vmem:[#allocation8 + $0xa30] sm:$0xff]
    %v1439 = vld [vmem:[#allocation8 + $0xa38] sm:$0xff]
    %v1440 = vld [vmem:[#allocation8 + $0xa40] sm:$0xff]
    %v1441 = vld [vmem:[#allocation8 + $0xa48] sm:$0xff]
    %v1442 = vld [vmem:[#allocation8 + $0xa50] sm:$0xff]
    %v1443 = vld [vmem:[#allocation8 + $0xa58] sm:$0xff]
    %v1444 = vld [vmem:[#allocation8 + $0xa60] sm:$0xff]
    %v1445 = vld [vmem:[#allocation8 + $0xa68] sm:$0xff]
    %v1446 = vld [vmem:[#allocation8 + $0xa70] sm:$0xff]
    %v1447 = vld [vmem:[#allocation8 + $0xa78] sm:$0xff]
    %v1448 = vld [vmem:[#allocation8 + $0xa80] sm:$0xff]
    %v1449 = vld [vmem:[#allocation8 + $0xa88] sm:$0xff]
    %v1450 = vld [vmem:[#allocation8 + $0xa90] sm:$0xff]
    %v1451 = vld [vmem:[#allocation8 + $0xa98] sm:$0xff]
    %v1452 = vld [vmem:[#allocation8 + $0xaa0] sm:$0xff]
    %v1453 = vld [vmem:[#allocation8 + $0xaa8] sm:$0xff]
    %v1454 = vld [vmem:[#allocation8 + $0xab0] sm:$0xff]
    %v1455 = vld [vmem:[#allocation8 + $0xab8] sm:$0xff]
    %v1456 = vld [vmem:[#allocation8 + $0xac0] sm:$0xff]
    %v1457 = vld [vmem:[#allocation8 + $0xac8] sm:$0xff]
    %v1458 = vld [vmem:[#allocation8 + $0xad0] sm:$0xff]
    %v1459 = vld [vmem:[#allocation8 + $0xad8] sm:$0xff]
    %v1460 = vld [vmem:[#allocation8 + $0xae0] sm:$0xff]
    %v1461 = vld [vmem:[#allocation8 + $0xae8] sm:$0xff]
    %v1462 = vld [vmem:[#allocation8 + $0xaf0] sm:$0xff]
    %v1463 = vld [vmem:[#allocation8 + $0xaf8] sm:$0xff]
    %v1464 = vld [vmem:[#allocation8 + $0xb00] sm:$0xff]
    %v1465 = vld [vmem:[#allocation8 + $0xb08] sm:$0xff]
    %v1466 = vld [vmem:[#allocation8 + $0xb10] sm:$0xff]
    %v1467 = vld [vmem:[#allocation8 + $0xb18] sm:$0xff]
    %v1468 = vld [vmem:[#allocation8 + $0xb20] sm:$0xff]
    %v1469 = vld [vmem:[#allocation8 + $0xb28] sm:$0xff]
    %v1470 = vld [vmem:[#allocation8 + $0xb30] sm:$0xff]
    %v1471 = vld [vmem:[#allocation8 + $0xb38] sm:$0xff]
    %v1472 = vld [vmem:[#allocation8 + $0xb40] sm:$0xff]
    %v1473 = vld [vmem:[#allocation8 + $0xb48] sm:$0xff]
    %v1474 = vld [vmem:[#allocation8 + $0xb50] sm:$0xff]
    %v1475 = vld [vmem:[#allocation8 + $0xb58] sm:$0xff]
    %v1476 = vld [vmem:[#allocation8 + $0xb60] sm:$0xff]
    %v1477 = vld [vmem:[#allocation8 + $0xb68] sm:$0xff]
    %v1478 = vld [vmem:[#allocation8 + $0xb70] sm:$0xff]
    %v1479 = vld [vmem:[#allocation8 + $0xb78] sm:$0xff]
    %v1480 = vld [vmem:[#allocation8 + $0xb80] sm:$0xff]
    %v1481 = vld [vmem:[#allocation8 + $0xb88] sm:$0xff]
    %v1482 = vld [vmem:[#allocation8 + $0xb90] sm:$0xff]
    %v1483 = vld [vmem:[#allocation8 + $0xb98] sm:$0xff]
    %v1484 = vld [vmem:[#allocation8 + $0xba0] sm:$0xff]
    %v1485 = vld [vmem:[#allocation8 + $0xba8] sm:$0xff]
    %v1486 = vld [vmem:[#allocation8 + $0xbb0] sm:$0xff]
    %v1487 = vld [vmem:[#allocation8 + $0xbb8] sm:$0xff]
    %v1488 = vld [vmem:[#allocation8 + $0xbc0] sm:$0xff]
    %v1489 = vld [vmem:[#allocation8 + $0xbc8] sm:$0xff]
    %v1490 = vld [vmem:[#allocation8 + $0xbd0] sm:$0xff]
    %v1491 = vld [vmem:[#allocation8 + $0xbd8] sm:$0xff]
    %v1492 = vld [vmem:[#allocation8 + $0xbe0] sm:$0xff]
    %v1493 = vld [vmem:[#allocation8 + $0xbe8] sm:$0xff]
    %v1494 = vld [vmem:[#allocation8 + $0xbf0] sm:$0xff]
    %v1495 = vld [vmem:[#allocation8 + $0xbf8] sm:$0xff]
    %v1496 = vld [vmem:[#allocation8 + $0xc00] sm:$0xff]
    %v1497 = vld [vmem:[#allocation8 + $0xc08] sm:$0xff]
    %v1498 = vld [vmem:[#allocation8 + $0xc10] sm:$0xff]
    %v1499 = vld [vmem:[#allocation8 + $0xc18] sm:$0xff]
    %v1500 = vld [vmem:[#allocation8 + $0xc20] sm:$0xff]
    %v1501 = vld [vmem:[#allocation8 + $0xc28] sm:$0xff]
    %v1502 = vld [vmem:[#allocation8 + $0xc30] sm:$0xff]
    %v1503 = vld [vmem:[#allocation8 + $0xc38] sm:$0xff]
    %v1504 = vld [vmem:[#allocation8 + $0xc40] sm:$0xff]
    %v1505 = vld [vmem:[#allocation8 + $0xc48] sm:$0xff]
    %v1506 = vld [vmem:[#allocation8 + $0xc50] sm:$0xff]
    %v1507 = vld [vmem:[#allocation8 + $0xc58] sm:$0xff]
    %v1508 = vld [vmem:[#allocation8 + $0xc60] sm:$0xff]
    %v1509 = vld [vmem:[#allocation8 + $0xc68] sm:$0xff]
    %v1510 = vld [vmem:[#allocation8 + $0xc70] sm:$0xff]
    %v1511 = vld [vmem:[#allocation8 + $0xc78] sm:$0xff]
    %v1512 = vld [vmem:[#allocation10] sm:$0x1f]
    %v1514 = vperm.slane %v1512, 0
    %v1515 = vperm.slane %v1512, 1
    %v1516 = vperm.slane %v1512, 2
    %v1517 = vperm.slane %v1512, 3
    %v1518 = vperm.slane %v1512, 4
    %1524 = vmatpush.msra.mxu0 %v1187
    %1525 = vmatpush.msra.mxu0 %v1182
    %1526 = vmatpush.msra.mxu0 %v1177
    %1527 = vmatpush.msra.mxu0 %v1172
    %1528 = vmatpush.msra.mxu0 %v1167
    %1529 = vmatpush.msra.mxu0 %v1162
    %1530 = vmatpush.msra.mxu0 %v1157
    %1531 = vmatpush.msra.mxu0 %v1152
    %1532 = vmatpush.msra.mxu0 %v1147
    %1533 = vmatpush.msra.mxu0 %v1142
    %1534 = vmatpush.msra.mxu0 %v1137
    %1535 = vmatpush.msra.mxu0 %v1132
    %1536 = vmatpush.msra.mxu0 %v1127
    %1537 = vmatpush.msra.mxu0 %v1122
    %1538 = vmatpush.msra.mxu0 %v1117
    %1539 = vmatpush.msra.mxu0 %v1112
    %1540 = vmatmul.f32.gmra.mxu0 %v1102
    %v1541 = vpop.f32.mrf.mxu0
    %v1542 = vadd.f32 %v1514, %v1541
    %1543 = vmatmul.f32.gmra.mxu0 %v1107
    %v1544 = vpop.f32.mrf.mxu0
    %v1545 = vadd.f32 %v1514, %v1544
    %1546 = vdwg.mxu0
    %1547 = vmatpush.msra.mxu0 %v1267
    %1548 = vmatpush.msra.mxu0 %v1262
    %1549 = vmatpush.msra.mxu0 %v1257
    %1550 = vmatpush.msra.mxu0 %v1252
    %1551 = vmatpush.msra.mxu0 %v1247
    %1552 = vmatpush.msra.mxu0 %v1242
    %1553 = vmatpush.msra.mxu0 %v1237
    %1554 = vmatpush.msra.mxu0 %v1232
    %1555 = vmatpush.msra.mxu0 %v1227
    %1556 = vmatpush.msra.mxu0 %v1222
    %1557 = vmatpush.msra.mxu0 %v1217
    %1558 = vmatpush.msra.mxu0 %v1212
    %1559 = vmatpush.msra.mxu0 %v1207
    %1560 = vmatpush.msra.mxu0 %v1202
    %1561 = vmatpush.msra.mxu0 %v1197
    %1562 = vmatpush.msra.mxu0 %v1192
    %1563 = vmatmul.f32.gmra.mxu0 %v1103
    %v1564 = vpop.f32.mrf.mxu0
    %v1565 = vadd.f32 %v1542, %v1564
    %1566 = vmatmul.f32.gmra.mxu0 %v1108
    %v1567 = vpop.f32.mrf.mxu0
    %v1568 = vadd.f32 %v1545, %v1567
    %1569 = vdwg.mxu0
    %1570 = vmatpush.msra.mxu0 %v1347
    %1571 = vmatpush.msra.mxu0 %v1342
    %1572 = vmatpush.msra.mxu0 %v1337
    %1573 = vmatpush.msra.mxu0 %v1332
    %1574 = vmatpush.msra.mxu0 %v1327
    %1575 = vmatpush.msra.mxu0 %v1322
    %1576 = vmatpush.msra.mxu0 %v1317
    %1577 = vmatpush.msra.mxu0 %v1312
    %1578 = vmatpush.msra.mxu0 %v1307
    %1579 = vmatpush.msra.mxu0 %v1302
    %1580 = vmatpush.msra.mxu0 %v1297
    %1581 = vmatpush.msra.mxu0 %v1292
    %1582 = vmatpush.msra.mxu0 %v1287
    %1583 = vmatpush.msra.mxu0 %v1282
    %1584 = vmatpush.msra.mxu0 %v1277
    %1585 = vmatpush.msra.mxu0 %v1272
    %1586 = vmatmul.f32.gmra.mxu0 %v1104
    %v1587 = vpop.f32.mrf.mxu0
    %v1588 = vadd.f32 %v1565, %v1587
    %1589 = vmatmul.f32.gmra.mxu0 %v1109
    %v1590 = vpop.f32.mrf.mxu0
    %v1591 = vadd.f32 %v1568, %v1590
    %1592 = vdwg.mxu0
    %1593 = vmatpush.msra.mxu0 %v1427
    %1594 = vmatpush.msra.mxu0 %v1422
    %1595 = vmatpush.msra.mxu0 %v1417
    %1596 = vmatpush.msra.mxu0 %v1412
    %1597 = vmatpush.msra.mxu0 %v1407
    %1598 = vmatpush.msra.mxu0 %v1402
    %1599 = vmatpush.msra.mxu0 %v1397
    %1600 = vmatpush.msra.mxu0 %v1392
    %1601 = vmatpush.msra.mxu0 %v1387
    %1602 = vmatpush.msra.mxu0 %v1382
    %1603 = vmatpush.msra.mxu0 %v1377
    %1604 = vmatpush.msra.mxu0 %v1372
    %1605 = vmatpush.msra.mxu0 %v1367
    %1606 = vmatpush.msra.mxu0 %v1362
    %1607 = vmatpush.msra.mxu0 %v1357
    %1608 = vmatpush.msra.mxu0 %v1352
    %1609 = vmatmul.f32.gmra.mxu0 %v1105
    %v1610 = vpop.f32.mrf.mxu0
    %v1611 = vadd.f32 %v1588, %v1610
    %1612 = vmatmul.f32.gmra.mxu0 %v1110
    %v1613 = vpop.f32.mrf.mxu0
    %v1614 = vadd.f32 %v1591, %v1613
    %1615 = vdwg.mxu0
    %1616 = vmatpush.msra.mxu0 %v1507
    %1617 = vmatpush.msra.mxu0 %v1502
    %1618 = vmatpush.msra.mxu0 %v1497
    %1619 = vmatpush.msra.mxu0 %v1492
    %1620 = vmatpush.msra.mxu0 %v1487
    %1621 = vmatpush.msra.mxu0 %v1482
    %1622 = vmatpush.msra.mxu0 %v1477
    %1623 = vmatpush.msra.mxu0 %v1472
    %1624 = vmatpush.msra.mxu0 %v1467
    %1625 = vmatpush.msra.mxu0 %v1462
    %1626 = vmatpush.msra.mxu0 %v1457
    %1627 = vmatpush.msra.mxu0 %v1452
    %1628 = vmatpush.msra.mxu0 %v1447
    %1629 = vmatpush.msra.mxu0 %v1442
    %1630 = vmatpush.msra.mxu0 %v1437
    %1631 = vmatpush.msra.mxu0 %v1432
    %1632 = vmatmul.f32.gmra.mxu0 %v1106
    %v1633 = vpop.f32.mrf.mxu0
    %v1634 = vadd.f32 %v1611, %v1633
    %1635 = vmatmul.f32.gmra.mxu0 %v1111
    %v1636 = vpop.f32.mrf.mxu0
    %v1637 = vadd.f32 %v1614, %v1636
    %1638 = vdwg.mxu0
    %1639 = vmatpush.msra.mxu0 %v1188
    %1640 = vmatpush.msra.mxu0 %v1183
    %1641 = vmatpush.msra.mxu0 %v1178
    %1642 = vmatpush.msra.mxu0 %v1173
    %1643 = vmatpush.msra.mxu0 %v1168
    %1644 = vmatpush.msra.mxu0 %v1163
    %1645 = vmatpush.msra.mxu0 %v1158
    %1646 = vmatpush.msra.mxu0 %v1153
    %1647 = vmatpush.msra.mxu0 %v1148
    %1648 = vmatpush.msra.mxu0 %v1143
    %1649 = vmatpush.msra.mxu0 %v1138
    %1650 = vmatpush.msra.mxu0 %v1133
    %1651 = vmatpush.msra.mxu0 %v1128
    %1652 = vmatpush.msra.mxu0 %v1123
    %1653 = vmatpush.msra.mxu0 %v1118
    %1654 = vmatpush.msra.mxu0 %v1113
    %1655 = vmatmul.f32.gmra.mxu0 %v1102
    %v1656 = vpop.f32.mrf.mxu0
    %v1657 = vadd.f32 %v1515, %v1656
    %1658 = vmatmul.f32.gmra.mxu0 %v1107
    %v1659 = vpop.f32.mrf.mxu0
    %v1660 = vadd.f32 %v1515, %v1659
    %1661 = vdwg.mxu0
    %1662 = vmatpush.msra.mxu0 %v1268
    %1663 = vmatpush.msra.mxu0 %v1263
    %1664 = vmatpush.msra.mxu0 %v1258
    %1665 = vmatpush.msra.mxu0 %v1253
    %1666 = vmatpush.msra.mxu0 %v1248
    %1667 = vmatpush.msra.mxu0 %v1243
    %1668 = vmatpush.msra.mxu0 %v1238
    %1669 = vmatpush.msra.mxu0 %v1233
    %1670 = vmatpush.msra.mxu0 %v1228
    %1671 = vmatpush.msra.mxu0 %v1223
    %1672 = vmatpush.msra.mxu0 %v1218
    %1673 = vmatpush.msra.mxu0 %v1213
    %1674 = vmatpush.msra.mxu0 %v1208
    %1675 = vmatpush.msra.mxu0 %v1203
    %1676 = vmatpush.msra.mxu0 %v1198
    %1677 = vmatpush.msra.mxu0 %v1193
    %1678 = vmatmul.f32.gmra.mxu0 %v1103
    %v1679 = vpop.f32.mrf.mxu0
    %v1680 = vadd.f32 %v1657, %v1679
    %1681 = vmatmul.f32.gmra.mxu0 %v1108
    %v1682 = vpop.f32.mrf.mxu0
    %v1683 = vadd.f32 %v1660, %v1682
    %1684 = vdwg.mxu0
    %1685 = vmatpush.msra.mxu0 %v1348
    %1686 = vmatpush.msra.mxu0 %v1343
    %1687 = vmatpush.msra.mxu0 %v1338
    %1688 = vmatpush.msra.mxu0 %v1333
    %1689 = vmatpush.msra.mxu0 %v1328
    %1690 = vmatpush.msra.mxu0 %v1323
    %1691 = vmatpush.msra.mxu0 %v1318
    %1692 = vmatpush.msra.mxu0 %v1313
    %1693 = vmatpush.msra.mxu0 %v1308
    %1694 = vmatpush.msra.mxu0 %v1303
    %1695 = vmatpush.msra.mxu0 %v1298
    %1696 = vmatpush.msra.mxu0 %v1293
    %1697 = vmatpush.msra.mxu0 %v1288
    %1698 = vmatpush.msra.mxu0 %v1283
    %1699 = vmatpush.msra.mxu0 %v1278
    %1700 = vmatpush.msra.mxu0 %v1273
    %1701 = vmatmul.f32.gmra.mxu0 %v1104
    %v1702 = vpop.f32.mrf.mxu0
    %v1703 = vadd.f32 %v1680, %v1702
    %1704 = vmatmul.f32.gmra.mxu0 %v1109
    %v1705 = vpop.f32.mrf.mxu0
    %v1706 = vadd.f32 %v1683, %v1705
    %1707 = vdwg.mxu0
    %1708 = vmatpush.msra.mxu0 %v1428
    %1709 = vmatpush.msra.mxu0 %v1423
    %1710 = vmatpush.msra.mxu0 %v1418
    %1711 = vmatpush.msra.mxu0 %v1413
    %1712 = vmatpush.msra.mxu0 %v1408
    %1713 = vmatpush.msra.mxu0 %v1403
    %1714 = vmatpush.msra.mxu0 %v1398
    %1715 = vmatpush.msra.mxu0 %v1393
    %1716 = vmatpush.msra.mxu0 %v1388
    %1717 = vmatpush.msra.mxu0 %v1383
    %1718 = vmatpush.msra.mxu0 %v1378
    %1719 = vmatpush.msra.mxu0 %v1373
    %1720 = vmatpush.msra.mxu0 %v1368
    %1721 = vmatpush.msra.mxu0 %v1363
    %1722 = vmatpush.msra.mxu0 %v1358
    %1723 = vmatpush.msra.mxu0 %v1353
    %1724 = vmatmul.f32.gmra.mxu0 %v1105
    %v1725 = vpop.f32.mrf.mxu0
    %v1726 = vadd.f32 %v1703, %v1725
    %1727 = vmatmul.f32.gmra.mxu0 %v1110
    %v1728 = vpop.f32.mrf.mxu0
    %v1729 = vadd.f32 %v1706, %v1728
    %1730 = vdwg.mxu0
    %1731 = vmatpush.msra.mxu0 %v1508
    %1732 = vmatpush.msra.mxu0 %v1503
    %1733 = vmatpush.msra.mxu0 %v1498
    %1734 = vmatpush.msra.mxu0 %v1493
    %1735 = vmatpush.msra.mxu0 %v1488
    %1736 = vmatpush.msra.mxu0 %v1483
    %1737 = vmatpush.msra.mxu0 %v1478
    %1738 = vmatpush.msra.mxu0 %v1473
    %1739 = vmatpush.msra.mxu0 %v1468
    %1740 = vmatpush.msra.mxu0 %v1463
    %1741 = vmatpush.msra.mxu0 %v1458
    %1742 = vmatpush.msra.mxu0 %v1453
    %1743 = vmatpush.msra.mxu0 %v1448
    %1744 = vmatpush.msra.mxu0 %v1443
    %1745 = vmatpush.msra.mxu0 %v1438
    %1746 = vmatpush.msra.mxu0 %v1433
    %1747 = vmatmul.f32.gmra.mxu0 %v1106
    %v1748 = vpop.f32.mrf.mxu0
    %v1749 = vadd.f32 %v1726, %v1748
    %1750 = vmatmul.f32.gmra.mxu0 %v1111
    %v1751 = vpop.f32.mrf.mxu0
    %v1752 = vadd.f32 %v1729, %v1751
    %1753 = vdwg.mxu0
    %1754 = vmatpush.msra.mxu0 %v1189
    %1755 = vmatpush.msra.mxu0 %v1184
    %1756 = vmatpush.msra.mxu0 %v1179
    %1757 = vmatpush.msra.mxu0 %v1174
    %1758 = vmatpush.msra.mxu0 %v1169
    %1759 = vmatpush.msra.mxu0 %v1164
    %1760 = vmatpush.msra.mxu0 %v1159
    %1761 = vmatpush.msra.mxu0 %v1154
    %1762 = vmatpush.msra.mxu0 %v1149
    %1763 = vmatpush.msra.mxu0 %v1144
    %1764 = vmatpush.msra.mxu0 %v1139
    %1765 = vmatpush.msra.mxu0 %v1134
    %1766 = vmatpush.msra.mxu0 %v1129
    %1767 = vmatpush.msra.mxu0 %v1124
    %1768 = vmatpush.msra.mxu0 %v1119
    %1769 = vmatpush.msra.mxu0 %v1114
    %1770 = vmatmul.f32.gmra.mxu0 %v1102
    %v1771 = vpop.f32.mrf.mxu0
    %v1772 = vadd.f32 %v1516, %v1771
    %1773 = vmatmul.f32.gmra.mxu0 %v1107
    %v1774 = vpop.f32.mrf.mxu0
    %v1775 = vadd.f32 %v1516, %v1774
    %1776 = vdwg.mxu0
    %1777 = vmatpush.msra.mxu0 %v1269
    %1778 = vmatpush.msra.mxu0 %v1264
    %1779 = vmatpush.msra.mxu0 %v1259
    %1780 = vmatpush.msra.mxu0 %v1254
    %1781 = vmatpush.msra.mxu0 %v1249
    %1782 = vmatpush.msra.mxu0 %v1244
    %1783 = vmatpush.msra.mxu0 %v1239
    %1784 = vmatpush.msra.mxu0 %v1234
    %1785 = vmatpush.msra.mxu0 %v1229
    %1786 = vmatpush.msra.mxu0 %v1224
    %1787 = vmatpush.msra.mxu0 %v1219
    %1788 = vmatpush.msra.mxu0 %v1214
    %1789 = vmatpush.msra.mxu0 %v1209
    %1790 = vmatpush.msra.mxu0 %v1204
    %1791 = vmatpush.msra.mxu0 %v1199
    %1792 = vmatpush.msra.mxu0 %v1194
    %1793 = vmatmul.f32.gmra.mxu0 %v1103
    %v1794 = vpop.f32.mrf.mxu0
    %v1795 = vadd.f32 %v1772, %v1794
    %1796 = vmatmul.f32.gmra.mxu0 %v1108
    %v1797 = vpop.f32.mrf.mxu0
    %v1798 = vadd.f32 %v1775, %v1797
    %1799 = vdwg.mxu0
    %1800 = vmatpush.msra.mxu0 %v1349
    %1801 = vmatpush.msra.mxu0 %v1344
    %1802 = vmatpush.msra.mxu0 %v1339
    %1803 = vmatpush.msra.mxu0 %v1334
    %1804 = vmatpush.msra.mxu0 %v1329
    %1805 = vmatpush.msra.mxu0 %v1324
    %1806 = vmatpush.msra.mxu0 %v1319
    %1807 = vmatpush.msra.mxu0 %v1314
    %1808 = vmatpush.msra.mxu0 %v1309
    %1809 = vmatpush.msra.mxu0 %v1304
    %1810 = vmatpush.msra.mxu0 %v1299
    %1811 = vmatpush.msra.mxu0 %v1294
    %1812 = vmatpush.msra.mxu0 %v1289
    %1813 = vmatpush.msra.mxu0 %v1284
    %1814 = vmatpush.msra.mxu0 %v1279
    %1815 = vmatpush.msra.mxu0 %v1274
    %1816 = vmatmul.f32.gmra.mxu0 %v1104
    %v1817 = vpop.f32.mrf.mxu0
    %v1818 = vadd.f32 %v1795, %v1817
    %1819 = vmatmul.f32.gmra.mxu0 %v1109
    %v1820 = vpop.f32.mrf.mxu0
    %v1821 = vadd.f32 %v1798, %v1820
    %1822 = vdwg.mxu0
    %1823 = vmatpush.msra.mxu0 %v1429
    %1824 = vmatpush.msra.mxu0 %v1424
    %1825 = vmatpush.msra.mxu0 %v1419
    %1826 = vmatpush.msra.mxu0 %v1414
    %1827 = vmatpush.msra.mxu0 %v1409
    %1828 = vmatpush.msra.mxu0 %v1404
    %1829 = vmatpush.msra.mxu0 %v1399
    %1830 = vmatpush.msra.mxu0 %v1394
    %1831 = vmatpush.msra.mxu0 %v1389
    %1832 = vmatpush.msra.mxu0 %v1384
    %1833 = vmatpush.msra.mxu0 %v1379
    %1834 = vmatpush.msra.mxu0 %v1374
    %1835 = vmatpush.msra.mxu0 %v1369
    %1836 = vmatpush.msra.mxu0 %v1364
    %1837 = vmatpush.msra.mxu0 %v1359
    %1838 = vmatpush.msra.mxu0 %v1354
    %1839 = vmatmul.f32.gmra.mxu0 %v1105
    %v1840 = vpop.f32.mrf.mxu0
    %v1841 = vadd.f32 %v1818, %v1840
    %1842 = vmatmul.f32.gmra.mxu0 %v1110
    %v1843 = vpop.f32.mrf.mxu0
    %v1844 = vadd.f32 %v1821, %v1843
    %1845 = vdwg.mxu0
    %1846 = vmatpush.msra.mxu0 %v1509
    %1847 = vmatpush.msra.mxu0 %v1504
    %1848 = vmatpush.msra.mxu0 %v1499
    %1849 = vmatpush.msra.mxu0 %v1494
    %1850 = vmatpush.msra.mxu0 %v1489
    %1851 = vmatpush.msra.mxu0 %v1484
    %1852 = vmatpush.msra.mxu0 %v1479
    %1853 = vmatpush.msra.mxu0 %v1474
    %1854 = vmatpush.msra.mxu0 %v1469
    %1855 = vmatpush.msra.mxu0 %v1464
    %1856 = vmatpush.msra.mxu0 %v1459
    %1857 = vmatpush.msra.mxu0 %v1454
    %1858 = vmatpush.msra.mxu0 %v1449
    %1859 = vmatpush.msra.mxu0 %v1444
    %1860 = vmatpush.msra.mxu0 %v1439
    %1861 = vmatpush.msra.mxu0 %v1434
    %1862 = vmatmul.f32.gmra.mxu0 %v1106
    %v1863 = vpop.f32.mrf.mxu0
    %v1864 = vadd.f32 %v1841, %v1863
    %1865 = vmatmul.f32.gmra.mxu0 %v1111
    %v1866 = vpop.f32.mrf.mxu0
    %v1867 = vadd.f32 %v1844, %v1866
    %1868 = vdwg.mxu0
    %1869 = vmatpush.msra.mxu0 %v1190
    %1870 = vmatpush.msra.mxu0 %v1185
    %1871 = vmatpush.msra.mxu0 %v1180
    %1872 = vmatpush.msra.mxu0 %v1175
    %1873 = vmatpush.msra.mxu0 %v1170
    %1874 = vmatpush.msra.mxu0 %v1165
    %1875 = vmatpush.msra.mxu0 %v1160
    %1876 = vmatpush.msra.mxu0 %v1155
    %1877 = vmatpush.msra.mxu0 %v1150
    %1878 = vmatpush.msra.mxu0 %v1145
    %1879 = vmatpush.msra.mxu0 %v1140
    %1880 = vmatpush.msra.mxu0 %v1135
    %1881 = vmatpush.msra.mxu0 %v1130
    %1882 = vmatpush.msra.mxu0 %v1125
    %1883 = vmatpush.msra.mxu0 %v1120
    %1884 = vmatpush.msra.mxu0 %v1115
    %1885 = vmatmul.f32.gmra.mxu0 %v1102
    %v1886 = vpop.f32.mrf.mxu0
    %v1887 = vadd.f32 %v1517, %v1886
    %1888 = vmatmul.f32.gmra.mxu0 %v1107
    %v1889 = vpop.f32.mrf.mxu0
    %v1890 = vadd.f32 %v1517, %v1889
    %1891 = vdwg.mxu0
    %1892 = vmatpush.msra.mxu0 %v1270
    %1893 = vmatpush.msra.mxu0 %v1265
    %1894 = vmatpush.msra.mxu0 %v1260
    %1895 = vmatpush.msra.mxu0 %v1255
    %1896 = vmatpush.msra.mxu0 %v1250
    %1897 = vmatpush.msra.mxu0 %v1245
    %1898 = vmatpush.msra.mxu0 %v1240
    %1899 = vmatpush.msra.mxu0 %v1235
    %1900 = vmatpush.msra.mxu0 %v1230
    %1901 = vmatpush.msra.mxu0 %v1225
    %1902 = vmatpush.msra.mxu0 %v1220
    %1903 = vmatpush.msra.mxu0 %v1215
    %1904 = vmatpush.msra.mxu0 %v1210
    %1905 = vmatpush.msra.mxu0 %v1205
    %1906 = vmatpush.msra.mxu0 %v1200
    %1907 = vmatpush.msra.mxu0 %v1195
    %1908 = vmatmul.f32.gmra.mxu0 %v1103
    %v1909 = vpop.f32.mrf.mxu0
    %v1910 = vadd.f32 %v1887, %v1909
    %1911 = vmatmul.f32.gmra.mxu0 %v1108
    %v1912 = vpop.f32.mrf.mxu0
    %v1913 = vadd.f32 %v1890, %v1912
    %1914 = vdwg.mxu0
    %1915 = vmatpush.msra.mxu0 %v1350
    %1916 = vmatpush.msra.mxu0 %v1345
    %1917 = vmatpush.msra.mxu0 %v1340
    %1918 = vmatpush.msra.mxu0 %v1335
    %1919 = vmatpush.msra.mxu0 %v1330
    %1920 = vmatpush.msra.mxu0 %v1325
    %1921 = vmatpush.msra.mxu0 %v1320
    %1922 = vmatpush.msra.mxu0 %v1315
    %1923 = vmatpush.msra.mxu0 %v1310
    %1924 = vmatpush.msra.mxu0 %v1305
    %1925 = vmatpush.msra.mxu0 %v1300
    %1926 = vmatpush.msra.mxu0 %v1295
    %1927 = vmatpush.msra.mxu0 %v1290
    %1928 = vmatpush.msra.mxu0 %v1285
    %1929 = vmatpush.msra.mxu0 %v1280
    %1930 = vmatpush.msra.mxu0 %v1275
    %1931 = vmatmul.f32.gmra.mxu0 %v1104
    %v1932 = vpop.f32.mrf.mxu0
    %v1933 = vadd.f32 %v1910, %v1932
    %1934 = vmatmul.f32.gmra.mxu0 %v1109
    %v1935 = vpop.f32.mrf.mxu0
    %v1936 = vadd.f32 %v1913, %v1935
    %1937 = vdwg.mxu0
    %1938 = vmatpush.msra.mxu0 %v1430
    %1939 = vmatpush.msra.mxu0 %v1425
    %1940 = vmatpush.msra.mxu0 %v1420
    %1941 = vmatpush.msra.mxu0 %v1415
    %1942 = vmatpush.msra.mxu0 %v1410
    %1943 = vmatpush.msra.mxu0 %v1405
    %1944 = vmatpush.msra.mxu0 %v1400
    %1945 = vmatpush.msra.mxu0 %v1395
    %1946 = vmatpush.msra.mxu0 %v1390
    %1947 = vmatpush.msra.mxu0 %v1385
    %1948 = vmatpush.msra.mxu0 %v1380
    %1949 = vmatpush.msra.mxu0 %v1375
    %1950 = vmatpush.msra.mxu0 %v1370
    %1951 = vmatpush.msra.mxu0 %v1365
    %1952 = vmatpush.msra.mxu0 %v1360
    %1953 = vmatpush.msra.mxu0 %v1355
    %1954 = vmatmul.f32.gmra.mxu0 %v1105
    %v1955 = vpop.f32.mrf.mxu0
    %v1956 = vadd.f32 %v1933, %v1955
    %1957 = vmatmul.f32.gmra.mxu0 %v1110
    %v1958 = vpop.f32.mrf.mxu0
    %v1959 = vadd.f32 %v1936, %v1958
    %1960 = vdwg.mxu0
    %1961 = vmatpush.msra.mxu0 %v1510
    %1962 = vmatpush.msra.mxu0 %v1505
    %1963 = vmatpush.msra.mxu0 %v1500
    %1964 = vmatpush.msra.mxu0 %v1495
    %1965 = vmatpush.msra.mxu0 %v1490
    %1966 = vmatpush.msra.mxu0 %v1485
    %1967 = vmatpush.msra.mxu0 %v1480
    %1968 = vmatpush.msra.mxu0 %v1475
    %1969 = vmatpush.msra.mxu0 %v1470
    %1970 = vmatpush.msra.mxu0 %v1465
    %1971 = vmatpush.msra.mxu0 %v1460
    %1972 = vmatpush.msra.mxu0 %v1455
    %1973 = vmatpush.msra.mxu0 %v1450
    %1974 = vmatpush.msra.mxu0 %v1445
    %1975 = vmatpush.msra.mxu0 %v1440
    %1976 = vmatpush.msra.mxu0 %v1435
    %1977 = vmatmul.f32.gmra.mxu0 %v1106
    %v1978 = vpop.f32.mrf.mxu0
    %v1979 = vadd.f32 %v1956, %v1978
    %1980 = vmatmul.f32.gmra.mxu0 %v1111
    %v1981 = vpop.f32.mrf.mxu0
    %v1982 = vadd.f32 %v1959, %v1981
    %1983 = vdwg.mxu0
    %1984 = vmatpush.msra.mxu0 %v1191
    %1985 = vmatpush.msra.mxu0 %v1186
    %1986 = vmatpush.msra.mxu0 %v1181
    %1987 = vmatpush.msra.mxu0 %v1176
    %1988 = vmatpush.msra.mxu0 %v1171
    %1989 = vmatpush.msra.mxu0 %v1166
    %1990 = vmatpush.msra.mxu0 %v1161
    %1991 = vmatpush.msra.mxu0 %v1156
    %1992 = vmatpush.msra.mxu0 %v1151
    %1993 = vmatpush.msra.mxu0 %v1146
    %1994 = vmatpush.msra.mxu0 %v1141
    %1995 = vmatpush.msra.mxu0 %v1136
    %1996 = vmatpush.msra.mxu0 %v1131
    %1997 = vmatpush.msra.mxu0 %v1126
    %1998 = vmatpush.msra.mxu0 %v1121
    %1999 = vmatpush.msra.mxu0 %v1116
    %2000 = vmatmul.f32.gmra.mxu0 %v1102
    %v2001 = vpop.f32.mrf.mxu0
    %v2002 = vadd.f32 %v1518, %v2001
    %2003 = vmatmul.f32.gmra.mxu0 %v1107
    %v2004 = vpop.f32.mrf.mxu0
    %v2005 = vadd.f32 %v1518, %v2004
    %2006 = vdwg.mxu0
    %2007 = vmatpush.msra.mxu0 %v1271
    %2008 = vmatpush.msra.mxu0 %v1266
    %2009 = vmatpush.msra.mxu0 %v1261
    %2010 = vmatpush.msra.mxu0 %v1256
    %2011 = vmatpush.msra.mxu0 %v1251
    %2012 = vmatpush.msra.mxu0 %v1246
    %2013 = vmatpush.msra.mxu0 %v1241
    %2014 = vmatpush.msra.mxu0 %v1236
    %2015 = vmatpush.msra.mxu0 %v1231
    %2016 = vmatpush.msra.mxu0 %v1226
    %2017 = vmatpush.msra.mxu0 %v1221
    %2018 = vmatpush.msra.mxu0 %v1216
    %2019 = vmatpush.msra.mxu0 %v1211
    %2020 = vmatpush.msra.mxu0 %v1206
    %2021 = vmatpush.msra.mxu0 %v1201
    %2022 = vmatpush.msra.mxu0 %v1196
    %2023 = vmatmul.f32.gmra.mxu0 %v1103
    %v2024 = vpop.f32.mrf.mxu0
    %v2025 = vadd.f32 %v2002, %v2024
    %2026 = vmatmul.f32.gmra.mxu0 %v1108
    %v2027 = vpop.f32.mrf.mxu0
    %v2028 = vadd.f32 %v2005, %v2027
    %2029 = vdwg.mxu0
    %2030 = vmatpush.msra.mxu0 %v1351
    %2031 = vmatpush.msra.mxu0 %v1346
    %2032 = vmatpush.msra.mxu0 %v1341
    %2033 = vmatpush.msra.mxu0 %v1336
    %2034 = vmatpush.msra.mxu0 %v1331
    %2035 = vmatpush.msra.mxu0 %v1326
    %2036 = vmatpush.msra.mxu0 %v1321
    %2037 = vmatpush.msra.mxu0 %v1316
    %2038 = vmatpush.msra.mxu0 %v1311
    %2039 = vmatpush.msra.mxu0 %v1306
    %2040 = vmatpush.msra.mxu0 %v1301
    %2041 = vmatpush.msra.mxu0 %v1296
    %2042 = vmatpush.msra.mxu0 %v1291
    %2043 = vmatpush.msra.mxu0 %v1286
    %2044 = vmatpush.msra.mxu0 %v1281
    %2045 = vmatpush.msra.mxu0 %v1276
    %2046 = vmatmul.f32.gmra.mxu0 %v1104
    %v2047 = vpop.f32.mrf.mxu0
    %v2048 = vadd.f32 %v2025, %v2047
    %2049 = vmatmul.f32.gmra.mxu0 %v1109
    %v2050 = vpop.f32.mrf.mxu0
    %v2051 = vadd.f32 %v2028, %v2050
    %2052 = vdwg.mxu0
    %2053 = vmatpush.msra.mxu0 %v1431
    %2054 = vmatpush.msra.mxu0 %v1426
    %2055 = vmatpush.msra.mxu0 %v1421
    %2056 = vmatpush.msra.mxu0 %v1416
    %2057 = vmatpush.msra.mxu0 %v1411
    %2058 = vmatpush.msra.mxu0 %v1406
    %2059 = vmatpush.msra.mxu0 %v1401
    %2060 = vmatpush.msra.mxu0 %v1396
    %2061 = vmatpush.msra.mxu0 %v1391
    %2062 = vmatpush.msra.mxu0 %v1386
    %2063 = vmatpush.msra.mxu0 %v1381
    %2064 = vmatpush.msra.mxu0 %v1376
    %2065 = vmatpush.msra.mxu0 %v1371
    %2066 = vmatpush.msra.mxu0 %v1366
    %2067 = vmatpush.msra.mxu0 %v1361
    %2068 = vmatpush.msra.mxu0 %v1356
    %2069 = vmatmul.f32.gmra.mxu0 %v1105
    %v2070 = vpop.f32.mrf.mxu0
    %v2071 = vadd.f32 %v2048, %v2070
    %2072 = vmatmul.f32.gmra.mxu0 %v1110
    %v2073 = vpop.f32.mrf.mxu0
    %v2074 = vadd.f32 %v2051, %v2073
    %2075 = vdwg.mxu0
    %2076 = vmatpush.msra.mxu0 %v1511
    %2077 = vmatpush.msra.mxu0 %v1506
    %2078 = vmatpush.msra.mxu0 %v1501
    %2079 = vmatpush.msra.mxu0 %v1496
    %2080 = vmatpush.msra.mxu0 %v1491
    %2081 = vmatpush.msra.mxu0 %v1486
    %2082 = vmatpush.msra.mxu0 %v1481
    %2083 = vmatpush.msra.mxu0 %v1476
    %2084 = vmatpush.msra.mxu0 %v1471
    %2085 = vmatpush.msra.mxu0 %v1466
    %2086 = vmatpush.msra.mxu0 %v1461
    %2087 = vmatpush.msra.mxu0 %v1456
    %2088 = vmatpush.msra.mxu0 %v1451
    %2089 = vmatpush.msra.mxu0 %v1446
    %2090 = vmatpush.msra.mxu0 %v1441
    %2091 = vmatpush.msra.mxu0 %v1436
    %2092 = vmatmul.f32.gmra.mxu0 %v1106
    %v2093 = vpop.f32.mrf.mxu0
    %v2094 = vadd.f32 %v2071, %v2093
    %2095 = vmatmul.f32.gmra.mxu0 %v1111
    %v2096 = vpop.f32.mrf.mxu0
    %v2097 = vadd.f32 %v2074, %v2096
    %2098 = vdwg.mxu0
    %2099 = vst [vmem:[#allocation11] sm:$0xff] %v1634
    %2100 = vst [vmem:[#allocation11 + $0x8] sm:$0xff] %v1749
    %2101 = vst [vmem:[#allocation11 + $0x10] sm:$0xff] %v1864
    %2102 = vst [vmem:[#allocation11 + $0x18] sm:$0xff] %v1979
    %2103 = vst [vmem:[#allocation11 + $0x20] sm:$0xff] %v2094
    %2104 = vst [vmem:[#allocation11 + $0x28] sm:$0xff] %v1637
    %2105 = vst [vmem:[#allocation11 + $0x30] sm:$0xff] %v1752
    %2106 = vst [vmem:[#allocation11 + $0x38] sm:$0xff] %v1867
    %2107 = vst [vmem:[#allocation11 + $0x40] sm:$0xff] %v1982
    %2108 = vst [vmem:[#allocation11 + $0x48] sm:$0xff] %v2097
    // Predicated region
    $region42: #{tpu_custom_call.1} parent=1 // pred_check
      _
    $region43: #{tpu_custom_call.1} parent=1 // pred_check_branch
      %2110 = sbr.rel (0) target = $region45
    $region44: #{tpu_custom_call.1} parent=1 // pred_region
      %2112 = vsyncadd [#allocation4], 0
      %s2113 = sshll.u32 [#allocation11], 4
      %s2114 = int_to_ptr.vmem [resolvable:$true] %s2113
      %s2115 = sshll.u32 %s5, 4
      %s2116 = int_to_ptr.hbm [resolvable:$true] %s2115
      %2121 = dma.vmem_to_hbm [thread:$0]  %s2114, 1280, %s2116, [#allocation4], 640, 640, 40
    $region45: #{tpu_custom_call.1} parent=1 // pred_fallthru
      _
    // Predicated region
    $region46: #{tpu_custom_call.1} parent=1 // pred_check
      _
    $region47: #{tpu_custom_call.1} parent=1 // pred_check_branch
      %2123 = sbr.rel (0) target = $region49
    $region48: #{tpu_custom_call.1} parent=1 // pred_region
      %2125 = dma.done [#allocation4], 1280
    $region49: #{tpu_custom_call.1} parent=1 // pred_fallthru
      _
    %2126 = vsyncpa [#allocation3], 1
    %2127 = vsyncpa [#allocation6], 1
    %2128 = vsyncpa [#allocation9], 1
    %2129 = vsyncpa [#allocation4], 1

</llo_original>
